<compile_context>
chip_gen: v6e
topology: v6e:2x2x1
jax: 0.10.0
libtpu: 0.0.40
codegen_flags: <defaults>
</compile_context>

<pallas_src>
import functools

import jax
import jax.numpy as jnp
from jax.experimental import pallas as pl
from jax.experimental.pallas import tpu as pltpu

IGNORE_INDEX = -1
AUX_WEIGHT = 0.4
OFFSET_WEIGHT = 0.3
LOC_REG_WEIGHT = 0.3


def _nll(x, onehot, valid):
    """Per-pixel cross-entropy from logits gathered at the target class; 0 where not valid.

    NOTE (correctness, per review): the mask must stay INSIDE this function — padded tail
    lanes hold unspecified data that can turn into inf/nan in exp/lse, so masking must
    happen before any reduction over lanes."""
    x = x.astype(jnp.float32)                                   # (C, TN)
    m = jnp.max(x, axis=0, keepdims=True)
    # TODO(synk): on v6e/v7x a bf16 exp would double EUP throughput if the EUP slot ever
    # saturates after the bf16-input switch; kept f32 (v5e has no bf16 EUP).
    lse = jnp.log(jnp.sum(jnp.exp(x - m), axis=0, keepdims=True)) + m
    picked = jnp.sum(x * onehot, axis=0, keepdims=True)
    return jnp.where(valid, lse - picked, 0.0)                  # (1, TN)


def _main_kernel(diff_ref, lt_ref, lb_ref, rt_ref, rb_ref,
                 grid_ref, off_ref, tgt_ref,
                 loss1_ref, sl1_ref, *, hw):
    i = pl.program_id(0)               # pixel-tile index (large axis -> megacore sharding)
    C = diff_ref.shape[1]
    TN = diff_ref.shape[2]

    tgt = tgt_ref[0]                                            # (1, TN) int32
    lane = jax.lax.broadcasted_iota(jnp.int32, (1, TN), 1)
    lane_valid = (i * TN + lane) < hw                           # mask tail remainder
    valid = lane_valid & (tgt != IGNORE_INDEX)

    cls_iota = jax.lax.broadcasted_iota(jnp.int32, (C, TN), 0)
    onehot = (cls_iota == tgt).astype(jnp.float32)              # (C, TN)

    l1 = _nll(diff_ref[0], onehot, valid)                       # pred1_loss1
    l3 = _nll(lt_ref[0], onehot, valid)                         # pred1_loss3
    l4 = _nll(lb_ref[0], onehot, valid)                         # pred1_loss4
    l5 = _nll(rt_ref[0], onehot, valid)                         # pred1_loss5
    l6 = _nll(rb_ref[0], onehot, valid)                         # pred1_loss6

    g = grid_ref[0].astype(jnp.float32)                         # (2, TN), always f32
    off = off_ref[0].astype(jnp.float32)                        # (2, TN), always f32
    c_lt = jnp.floor(g) - g
    c_rb = jnp.ceil(g) - g
    c_lb = jnp.concatenate([c_rb[0:1, :], c_lt[1:2, :]], axis=0)
    c_rt = jnp.concatenate([c_lt[0:1, :], c_rb[1:2, :]], axis=0)

    gt_off = off
    min_err = l1
    for err, coords in ((l3, c_lt), (l4, c_lb), (l5, c_rt), (l6, c_rb)):
        em = (err < min_err).astype(jnp.float32)                # (1, TN), broadcasts
        gt_off = gt_off + em * (coords - gt_off)
        min_err = jnp.minimum(err, min_err)

    w1 = (l1 > min_err).astype(jnp.float32) * OFFSET_WEIGHT + 1.0
    weighted_l1 = l1 * w1                                       # 0 on ignored / padded lanes

    d = gt_off - off
    ad = jnp.abs(d)
    sl1 = jnp.where(ad < 1.0, 0.5 * d * d, ad - 0.5)            # SmoothL1, beta=1
    sl1 = jnp.where(lane_valid, sl1, 0.0)                       # drop padded-lane garbage

    # (1,1,1,128) partial-sum blocks: lane-dense (unmasked vst), 8x less writeback than 8x128.
    loss1_ref[...] = jnp.full(loss1_ref.shape, jnp.sum(weighted_l1), jnp.float32)
    sl1_ref[...] = jnp.full(sl1_ref.shape, jnp.sum(sl1), jnp.float32)


def _nearest_resize_labels(target, H, W):
    # PyTorch F.interpolate(mode='nearest'): src = floor(dst * in/out)
    # TODO(synk): an int8/int16 target intermediate (classes < 128) would shrink this
    # stream 2-4x; kept int32 to avoid packed-dtype lowering risk on the (1,1,TN) block.
    B, Ht, Wt = target.shape
    sh = (jnp.arange(H) * Ht) // H
    sw = (jnp.arange(W) * Wt) // W
    return target[:, sh][:, :, sw]


def _vmem_budgets():
    """(input-stream VMEM budget, vmem_limit_bytes) chosen per TPU generation.

    v7x has 64 MiB VMEM per TensorCore -> keep headroom; v4/v5e/v6e have 128 MiB."""
    try:
        kind = jax.devices()[0].device_kind.lower()
    except Exception:
        kind = ""
    if "v2" in kind or "v3" in kind:
        return 10 << 20, 14 << 20          # tiny-VMEM fallback
    if "v7" in kind:
        return 28 << 20, 48 << 20          # 64 MiB/TC: stay well under
    return 44 << 20, 64 << 20              # v4 / v5e / v6e (128 MiB physical)


def _pick_tile(n_pixels, bytes_per_pixel, max_tile, vmem_budget_bytes):
    """Largest lane tile (multiple of 128, or full extent) whose double-buffered input
    footprint fits the VMEM budget. Dtype-aware via bytes_per_pixel (bf16 doubles the cap)."""
    per_lane = 2 * bytes_per_pixel          # x2: every input stream is double-buffered
    cap = max(128, (vmem_budget_bytes // per_lane) // 128 * 128)
    cap = min(cap, max_tile)
    if n_pixels <= cap:
        return n_pixels                     # single full-extent block (always legal)
    return cap                              # multiple of 128; tail masked in-kernel


@functools.partial(jax.jit, static_argnames=("max_tile",))
def offset_losses_forward(pred1_diffdup, pred1_detup, grid, pred1_lt, pred1_lb,
                          pred1_rt, pred1_rb, pred2, offsets, target, max_tile=8192):
    # pred1_detup only feeds pred1_loss2 in torch, which is never used -> not needed.
    del pred1_detup
    B, C, H, W = pred1_diffdup.shape
    HW = H * W
    N = B * HW

    # Only the 5 logit streams may be bf16 (per review); grid/offsets stay f32 so that
    # floor/ceil and the SmoothL1 path are bit-identical, target stays int32.
    grid = grid.astype(jnp.float32)
    offsets = offsets.astype(jnp.float32)
    target = target.astype(jnp.int32)

    target_up = _nearest_resize_labels(target, H, W)            # (B, H, W) int32
    tgt1 = target_up.reshape(B, 1, HW)

    # Free views (no transpose, no extra HBM pass): (B,C,H,W) -> (B,C,H*W)
    diff = pred1_diffdup.reshape(B, C, HW)
    lt = pred1_lt.reshape(B, C, HW)
    lb = pred1_lb.reshape(B, C, HW)
    rt = pred1_rt.reshape(B, C, HW)
    rb = pred1_rb.reshape(B, C, HW)
    g2 = grid.reshape(B, 2, HW)
    off2 = offsets.reshape(B, 2, HW)

    budget, vmem_limit = _vmem_budgets()
    logit_bytes = jnp.dtype(pred1_diffdup.dtype).itemsize       # 2 for bf16, 4 for f32
    bytes_per_pixel = 5 * C * logit_bytes + 2 * 2 * 4 + 4       # 5 logit heads + grid + offsets + tgt
    tile = _pick_tile(HW, bytes_per_pixel, max_tile, budget)
    GI = -(-HW // tile)

    # Grid is (GI, B): the large pixel-tile axis comes first so megacore sharding on v7x
    # splits it (B may be 1/odd); both axes are independent -> "parallel".
    logit_spec = pl.BlockSpec((1, C, tile), lambda i, b: (b, 0, i))
    two_spec = pl.BlockSpec((1, 2, tile), lambda i, b: (b, 0, i))
    tgt_spec = pl.BlockSpec((1, 1, tile), lambda i, b: (b, 0, i))
    part_spec = pl.BlockSpec((1, 1, 1, 128), lambda i, b: (i, b, 0, 0))
    part_shape = jax.ShapeDtypeStruct((GI, B, 1, 128), jnp.float32)

    loss1_parts, sl1_parts = pl.pallas_call(
        functools.partial(_main_kernel, hw=HW),
        out_shape=(part_shape, part_shape),
        grid=(GI, B),
        in_specs=[logit_spec] * 5 + [two_spec, two_spec, tgt_spec],
        out_specs=(part_spec, part_spec),
        compiler_params=pltpu.CompilerParams(
            dimension_semantics=("parallel", "parallel"),
            vmem_limit_bytes=vmem_limit),
    )(diff, lt, lb, rt, rb, g2, off2, tgt1)

    loss1 = jnp.sum(loss1_parts[:, :, 0, 0]) / N                # mean over B*1*H*W
    # Intentional (matches torch SmoothL1Loss(reduction='mean')): divide by 2*N including
    # ignore-index pixels — they contribute exactly 0.
    loss4 = jnp.sum(sl1_parts[:, :, 0, 0]) / (2 * N)

    # Aux CE on pred2 (1/8 resolution, ~1/64 of the traffic): plain XLA per perf review —
    # a dedicated pallas_call here is launch-overhead dominated.
    ls2 = jax.nn.log_softmax(pred2.astype(jnp.float32), axis=1)
    oh2 = jax.nn.one_hot(jnp.clip(target, 0), pred2.shape[1], axis=1, dtype=jnp.float32)
    ce = -jnp.sum(ls2 * oh2, axis=1)
    mask = (target != IGNORE_INDEX).astype(jnp.float32)
    loss2 = jnp.sum(ce * mask) / jnp.sum(mask)

    return loss1 + AUX_WEIGHT * loss2 + LOC_REG_WEIGHT * loss4


# ------------------------- pure-JAX reference -------------------------
def _reference(pred1_diffdup, pred1_detup, grid, pred1_lt, pred1_lb,
               pred1_rt, pred1_rb, pred2, offsets, target):
    def nll(logits, tgt):
        ls = jax.nn.log_softmax(logits.astype(jnp.float32), axis=1)
        oh = jax.nn.one_hot(jnp.clip(tgt, 0), logits.shape[1], axis=1)
        l = -jnp.sum(ls * oh, axis=1, keepdims=True)
        return jnp.where((tgt != IGNORE_INDEX)[:, None], l, 0.0)

    B, C, H, W = pred1_diffdup.shape
    grid = grid.astype(jnp.float32)
    offsets = offsets.astype(jnp.float32)
    t1 = _nearest_resize_labels(target.astype(jnp.int32), H, W)
    l1 = nll(pred1_diffdup, t1)
    l3 = nll(pred1_lt, t1)
    l4 = nll(pred1_lb, t1)
    l5 = nll(pred1_rt, t1)
    l6 = nll(pred1_rb, t1)

    c_lt = jnp.floor(grid) - grid
    c_rb = jnp.ceil(grid) - grid
    c_lb = jnp.concatenate([c_rb[:, 0:1], c_lt[:, 1:2]], axis=1)
    c_rt = jnp.concatenate([c_lt[:, 0:1], c_rb[:, 1:2]], axis=1)

    gt_off = offsets
    min_err = l1
    for err, coords in ((l3, c_lt), (l4, c_lb), (l5, c_rt), (l6, c_rb)):
        em = (err < min_err).astype(jnp.float32)
        gt_off = gt_off + em * (coords - gt_off)
        min_err = jnp.minimum(err, min_err)

    em1 = (l1 > min_err).astype(jnp.float32) * OFFSET_WEIGHT + 1.0
    loss1 = jnp.mean(l1 * em1)

    d = gt_off - offsets
    ad = jnp.abs(d)
    loss4 = jnp.mean(jnp.where(ad < 1.0, 0.5 * d * d, ad - 0.5))

    ls2 = jax.nn.log_softmax(pred2.astype(jnp.float32), axis=1)
    oh2 = jax.nn.one_hot(jnp.clip(target, 0), pred2.shape[1], axis=1)
    ce = -jnp.sum(ls2 * oh2, axis=1)
    mask = (target != IGNORE_INDEX).astype(jnp.float32)
    loss2 = jnp.sum(ce * mask) / jnp.sum(mask)

    return loss1 + AUX_WEIGHT * loss2 + LOC_REG_WEIGHT * loss4


if __name__ == "__main__":
    key = jax.random.PRNGKey(0)
    B, C, H, W = 2, 4, 16, 16      # pred1_* resolution
    Ht, Wt = 8, 8                  # target / pred2 resolution
    ks = jax.random.split(key, 10)

    pred1_diffdup = jax.random.normal(ks[0], (B, C, H, W), jnp.float32)
    pred1_detup = jax.random.normal(ks[1], (B, C, H, W), jnp.float32)  # unused downstream
    pred1_lt = jax.random.normal(ks[2], (B, C, H, W), jnp.float32)
    pred1_lb = jax.random.normal(ks[3], (B, C, H, W), jnp.float32)
    pred1_rt = jax.random.normal(ks[4], (B, C, H, W), jnp.float32)
    pred1_rb = jax.random.normal(ks[5], (B, C, H, W), jnp.float32)
    grid = jax.random.uniform(ks[6], (B, 2, H, W), jnp.float32) * 7.0
    offsets = jax.random.normal(ks[7], (B, 2, H, W), jnp.float32) * 0.5
    pred2 = jax.random.normal(ks[8], (B, C, Ht, Wt), jnp.float32)
    target = jax.random.randint(ks[9], (B, Ht, Wt), 0, C).astype(jnp.int32)
    # sprinkle a few ignore_index pixels
    target = target.at[0, 0, 0].set(IGNORE_INDEX).at[1, 3, 5].set(IGNORE_INDEX)

    # ---- f32 path ----
    out = offset_losses_forward(pred1_diffdup, pred1_detup, grid, pred1_lt,
                                pred1_lb, pred1_rt, pred1_rb, pred2, offsets,
                                target)
    out = jax.block_until_ready(out)
    ref = _reference(pred1_diffdup, pred1_detup, grid, pred1_lt, pred1_lb,
                     pred1_rt, pred1_rb, pred2, offsets, target)
    assert jnp.allclose(out, ref, rtol=1e-4, atol=1e-5), (out, ref)

    # ---- bf16 logit path (the big HBM-bytes lever; kernel upcasts internally) ----
    bf = lambda x: x.astype(jnp.bfloat16)
    up = lambda x: x.astype(jnp.bfloat16).astype(jnp.float32)
    out_bf = offset_losses_forward(bf(pred1_diffdup), bf(pred1_detup), grid,
                                   bf(pred1_lt), bf(pred1_lb), bf(pred1_rt),
                                   bf(pred1_rb), pred2, offsets, target)
    out_bf = jax.block_until_ready(out_bf)
    ref_bf = _reference(up(pred1_diffdup), up(pred1_detup), grid, up(pred1_lt),
                        up(pred1_lb), up(pred1_rt), up(pred1_rb), pred2,
                        offsets, target)
    assert jnp.allclose(out_bf, ref_bf, rtol=1e-3, atol=1e-3), (out_bf, ref_bf)

    # ---- tail-masking path (HW not a multiple of the lane tile) ----
    H2, W2, Ht2, Wt2 = 20, 10, 5, 5
    ks2 = jax.random.split(jax.random.PRNGKey(1), 10)
    p_diff = jax.random.normal(ks2[0], (B, C, H2, W2), jnp.float32)
    p_det = jax.random.normal(ks2[1], (B, C, H2, W2), jnp.float32)
    p_lt = jax.random.normal(ks2[2], (B, C, H2, W2), jnp.float32)
    p_lb = jax.random.normal(ks2[3], (B, C, H2, W2), jnp.float32)
    p_rt = jax.random.normal(ks2[4], (B, C, H2, W2), jnp.float32)
    p_rb = jax.random.normal(ks2[5], (B, C, H2, W2), jnp.float32)
    grid2 = jax.random.uniform(ks2[6], (B, 2, H2, W2), jnp.float32) * 7.0
    off2 = jax.random.normal(ks2[7], (B, 2, H2, W2), jnp.float32) * 0.5
    pred2b = jax.random.normal(ks2[8], (B, C, Ht2, Wt2), jnp.float32)
    target2 = jax.random.randint(ks2[9], (B, Ht2, Wt2), 0, C).astype(jnp.int32)
    target2 = target2.at[0, 1, 1].set(IGNORE_INDEX)

    out_tail = offset_losses_forward(p_diff, p_det, grid2, p_lt, p_lb, p_rt, p_rb,
                                     pred2b, off2, target2, max_tile=128)
    out_tail = jax.block_until_ready(out_tail)
    ref_tail = _reference(p_diff, p_det, grid2, p_lt, p_lb, p_rt, p_rb,
                          pred2b, off2, target2)
    assert jnp.allclose(out_tail, ref_tail, rtol=1e-4, atol=1e-5), (out_tail, ref_tail)

    print("KERNEL_OK")
</pallas_src>

<mosaic_0001>
module attributes {stable_mosaic.version = 11 : i64} {
  func.func @_main_kernel(%arg0: i32, %arg1: i32, %arg2: memref<1x4x256xf32, #tpu.memory_space<vmem>>, %arg3: memref<1x4x256xf32, #tpu.memory_space<vmem>>, %arg4: memref<1x4x256xf32, #tpu.memory_space<vmem>>, %arg5: memref<1x4x256xf32, #tpu.memory_space<vmem>>, %arg6: memref<1x4x256xf32, #tpu.memory_space<vmem>>, %arg7: memref<1x2x256xf32, #tpu.memory_space<vmem>>, %arg8: memref<1x2x256xf32, #tpu.memory_space<vmem>>, %arg9: memref<1x1x256xi32, #tpu.memory_space<vmem>>, %arg10: memref<1x1x1x128xf32, #tpu.memory_space<vmem>>, %arg11: memref<1x1x1x128xf32, #tpu.memory_space<vmem>>) attributes {dimension_semantics = [#tpu.dimension_semantics<parallel>, #tpu.dimension_semantics<parallel>], iteration_bounds = array<i64: 1, 2>, scalar_prefetch = 0 : i64, scratch_operands = 0 : i64, tpu.core_type = #tpu.core_type<tc>, window_params = [{transform_indices = @transform_0, window_bounds = array<i64: 1, 4, 256>}, {transform_indices = @transform_1, window_bounds = array<i64: 1, 4, 256>}, {transform_indices = @transform_2, window_bounds = array<i64: 1, 4, 256>}, {transform_indices = @transform_3, window_bounds = array<i64: 1, 4, 256>}, {transform_indices = @transform_4, window_bounds = array<i64: 1, 4, 256>}, {transform_indices = @transform_5, window_bounds = array<i64: 1, 2, 256>}, {transform_indices = @transform_6, window_bounds = array<i64: 1, 2, 256>}, {transform_indices = @transform_7, window_bounds = array<i64: 1, 1, 256>}, {transform_indices = @transform_8, window_bounds = array<i64: 1, 1, 1, 128>}, {transform_indices = @transform_9, window_bounds = array<i64: 1, 1, 1, 128>}]} {
    %c0 = arith.constant 0 : index
    %c0_0 = arith.constant 0 : index
    %c0_1 = arith.constant 0 : index
    %0 = vector.load %arg9[%c0, %c0_0, %c0_1] : memref<1x1x256xi32, #tpu.memory_space<vmem>>, vector<1x1x256xi32>
    %1 = vector.shape_cast %0 : vector<1x1x256xi32> to vector<1x256xi32>
    %2 = tpu.iota {dimensions = array<i32: 1>} : vector<1x256xi32>
    %c256_i32 = arith.constant 256 : i32
    %3 = arith.muli %arg0, %c256_i32 : i32
    %4 = vector.broadcast %3 : i32 to vector<1x256xi32>
    %5 = arith.addi %4, %2 : vector<1x256xi32>
    %c256_i32_2 = arith.constant 256 : i32
    %6 = vector.broadcast %c256_i32_2 : i32 to vector<1x256xi32>
    %7 = arith.cmpi slt, %5, %6 : vector<1x256xi32>
    %c-1_i32 = arith.constant -1 : i32
    %8 = vector.broadcast %c-1_i32 : i32 to vector<1x256xi32>
    %9 = arith.cmpi ne, %1, %8 : vector<1x256xi32>
    %10 = arith.andi %7, %9 : vector<1x256xi1>
    %11 = tpu.iota {dimensions = array<i32: 0>} : vector<4x256xi32>
    %12 = vector.broadcast %1 : vector<1x256xi32> to vector<4x256xi32>
    %13 = arith.cmpi eq, %11, %12 : vector<4x256xi32>
    %14 = arith.extui %13 : vector<4x256xi1> to vector<4x256xi32>
    %15 = arith.sitofp %14 : vector<4x256xi32> to vector<4x256xf32>
    %c0_3 = arith.constant 0 : index
    %c0_4 = arith.constant 0 : index
    %c0_5 = arith.constant 0 : index
    %16 = vector.load %arg2[%c0_3, %c0_4, %c0_5] : memref<1x4x256xf32, #tpu.memory_space<vmem>>, vector<1x4x256xf32>
    %17 = vector.shape_cast %16 : vector<1x4x256xf32> to vector<4x256xf32>
    %cst = arith.constant dense<0xFF800000> : vector<256xf32>
    %18 = vector.multi_reduction <maximumf>, %17, %cst [0] : vector<4x256xf32> to vector<256xf32>
    %19 = vector.shape_cast %18 : vector<256xf32> to vector<1x256xf32>
    %20 = vector.broadcast %19 : vector<1x256xf32> to vector<4x256xf32>
    %21 = arith.subf %17, %20 : vector<4x256xf32>
    %22 = math.exp %21 : vector<4x256xf32>
    %cst_6 = arith.constant dense<0.000000e+00> : vector<256xf32>
    %23 = vector.multi_reduction <add>, %22, %cst_6 [0] : vector<4x256xf32> to vector<256xf32>
    %24 = vector.shape_cast %23 : vector<256xf32> to vector<1x256xf32>
    %25 = math.log %24 : vector<1x256xf32>
    %26 = arith.addf %25, %19 : vector<1x256xf32>
    %27 = arith.mulf %17, %15 : vector<4x256xf32>
    %cst_7 = arith.constant dense<0.000000e+00> : vector<256xf32>
    %28 = vector.multi_reduction <add>, %27, %cst_7 [0] : vector<4x256xf32> to vector<256xf32>
    %29 = vector.shape_cast %28 : vector<256xf32> to vector<1x256xf32>
    %30 = arith.subf %26, %29 : vector<1x256xf32>
    %cst_8 = arith.constant 0.000000e+00 : f32
    %31 = vector.broadcast %cst_8 : f32 to vector<1x256xf32>
    %32 = arith.select %10, %30, %31 : vector<1x256xi1>, vector<1x256xf32>
    %c0_9 = arith.constant 0 : index
    %c0_10 = arith.constant 0 : index
    %c0_11 = arith.constant 0 : index
    %33 = vector.load %arg3[%c0_9, %c0_10, %c0_11] : memref<1x4x256xf32, #tpu.memory_space<vmem>>, vector<1x4x256xf32>
    %34 = vector.shape_cast %33 : vector<1x4x256xf32> to vector<4x256xf32>
    %cst_12 = arith.constant dense<0xFF800000> : vector<256xf32>
    %35 = vector.multi_reduction <maximumf>, %34, %cst_12 [0] : vector<4x256xf32> to vector<256xf32>
    %36 = vector.shape_cast %35 : vector<256xf32> to vector<1x256xf32>
    %37 = vector.broadcast %36 : vector<1x256xf32> to vector<4x256xf32>
    %38 = arith.subf %34, %37 : vector<4x256xf32>
    %39 = math.exp %38 : vector<4x256xf32>
    %cst_13 = arith.constant dense<0.000000e+00> : vector<256xf32>
    %40 = vector.multi_reduction <add>, %39, %cst_13 [0] : vector<4x256xf32> to vector<256xf32>
    %41 = vector.shape_cast %40 : vector<256xf32> to vector<1x256xf32>
    %42 = math.log %41 : vector<1x256xf32>
    %43 = arith.addf %42, %36 : vector<1x256xf32>
    %44 = arith.mulf %34, %15 : vector<4x256xf32>
    %cst_14 = arith.constant dense<0.000000e+00> : vector<256xf32>
    %45 = vector.multi_reduction <add>, %44, %cst_14 [0] : vector<4x256xf32> to vector<256xf32>
    %46 = vector.shape_cast %45 : vector<256xf32> to vector<1x256xf32>
    %47 = arith.subf %43, %46 : vector<1x256xf32>
    %cst_15 = arith.constant 0.000000e+00 : f32
    %48 = vector.broadcast %cst_15 : f32 to vector<1x256xf32>
    %49 = arith.select %10, %47, %48 : vector<1x256xi1>, vector<1x256xf32>
    %c0_16 = arith.constant 0 : index
    %c0_17 = arith.constant 0 : index
    %c0_18 = arith.constant 0 : index
    %50 = vector.load %arg4[%c0_16, %c0_17, %c0_18] : memref<1x4x256xf32, #tpu.memory_space<vmem>>, vector<1x4x256xf32>
    %51 = vector.shape_cast %50 : vector<1x4x256xf32> to vector<4x256xf32>
    %cst_19 = arith.constant dense<0xFF800000> : vector<256xf32>
    %52 = vector.multi_reduction <maximumf>, %51, %cst_19 [0] : vector<4x256xf32> to vector<256xf32>
    %53 = vector.shape_cast %52 : vector<256xf32> to vector<1x256xf32>
    %54 = vector.broadcast %53 : vector<1x256xf32> to vector<4x256xf32>
    %55 = arith.subf %51, %54 : vector<4x256xf32>
    %56 = math.exp %55 : vector<4x256xf32>
    %cst_20 = arith.constant dense<0.000000e+00> : vector<256xf32>
    %57 = vector.multi_reduction <add>, %56, %cst_20 [0] : vector<4x256xf32> to vector<256xf32>
    %58 = vector.shape_cast %57 : vector<256xf32> to vector<1x256xf32>
    %59 = math.log %58 : vector<1x256xf32>
    %60 = arith.addf %59, %53 : vector<1x256xf32>
    %61 = arith.mulf %51, %15 : vector<4x256xf32>
    %cst_21 = arith.constant dense<0.000000e+00> : vector<256xf32>
    %62 = vector.multi_reduction <add>, %61, %cst_21 [0] : vector<4x256xf32> to vector<256xf32>
    %63 = vector.shape_cast %62 : vector<256xf32> to vector<1x256xf32>
    %64 = arith.subf %60, %63 : vector<1x256xf32>
    %cst_22 = arith.constant 0.000000e+00 : f32
    %65 = vector.broadcast %cst_22 : f32 to vector<1x256xf32>
    %66 = arith.select %10, %64, %65 : vector<1x256xi1>, vector<1x256xf32>
    %c0_23 = arith.constant 0 : index
    %c0_24 = arith.constant 0 : index
    %c0_25 = arith.constant 0 : index
    %67 = vector.load %arg5[%c0_23, %c0_24, %c0_25] : memref<1x4x256xf32, #tpu.memory_space<vmem>>, vector<1x4x256xf32>
    %68 = vector.shape_cast %67 : vector<1x4x256xf32> to vector<4x256xf32>
    %cst_26 = arith.constant dense<0xFF800000> : vector<256xf32>
    %69 = vector.multi_reduction <maximumf>, %68, %cst_26 [0] : vector<4x256xf32> to vector<256xf32>
    %70 = vector.shape_cast %69 : vector<256xf32> to vector<1x256xf32>
    %71 = vector.broadcast %70 : vector<1x256xf32> to vector<4x256xf32>
    %72 = arith.subf %68, %71 : vector<4x256xf32>
    %73 = math.exp %72 : vector<4x256xf32>
    %cst_27 = arith.constant dense<0.000000e+00> : vector<256xf32>
    %74 = vector.multi_reduction <add>, %73, %cst_27 [0] : vector<4x256xf32> to vector<256xf32>
    %75 = vector.shape_cast %74 : vector<256xf32> to vector<1x256xf32>
    %76 = math.log %75 : vector<1x256xf32>
    %77 = arith.addf %76, %70 : vector<1x256xf32>
    %78 = arith.mulf %68, %15 : vector<4x256xf32>
    %cst_28 = arith.constant dense<0.000000e+00> : vector<256xf32>
    %79 = vector.multi_reduction <add>, %78, %cst_28 [0] : vector<4x256xf32> to vector<256xf32>
    %80 = vector.shape_cast %79 : vector<256xf32> to vector<1x256xf32>
    %81 = arith.subf %77, %80 : vector<1x256xf32>
    %cst_29 = arith.constant 0.000000e+00 : f32
    %82 = vector.broadcast %cst_29 : f32 to vector<1x256xf32>
    %83 = arith.select %10, %81, %82 : vector<1x256xi1>, vector<1x256xf32>
    %c0_30 = arith.constant 0 : index
    %c0_31 = arith.constant 0 : index
    %c0_32 = arith.constant 0 : index
    %84 = vector.load %arg6[%c0_30, %c0_31, %c0_32] : memref<1x4x256xf32, #tpu.memory_space<vmem>>, vector<1x4x256xf32>
    %85 = vector.shape_cast %84 : vector<1x4x256xf32> to vector<4x256xf32>
    %cst_33 = arith.constant dense<0xFF800000> : vector<256xf32>
    %86 = vector.multi_reduction <maximumf>, %85, %cst_33 [0] : vector<4x256xf32> to vector<256xf32>
    %87 = vector.shape_cast %86 : vector<256xf32> to vector<1x256xf32>
    %88 = vector.broadcast %87 : vector<1x256xf32> to vector<4x256xf32>
    %89 = arith.subf %85, %88 : vector<4x256xf32>
    %90 = math.exp %89 : vector<4x256xf32>
    %cst_34 = arith.constant dense<0.000000e+00> : vector<256xf32>
    %91 = vector.multi_reduction <add>, %90, %cst_34 [0] : vector<4x256xf32> to vector<256xf32>
    %92 = vector.shape_cast %91 : vector<256xf32> to vector<1x256xf32>
    %93 = math.log %92 : vector<1x256xf32>
    %94 = arith.addf %93, %87 : vector<1x256xf32>
    %95 = arith.mulf %85, %15 : vector<4x256xf32>
    %cst_35 = arith.constant dense<0.000000e+00> : vector<256xf32>
    %96 = vector.multi_reduction <add>, %95, %cst_35 [0] : vector<4x256xf32> to vector<256xf32>
    %97 = vector.shape_cast %96 : vector<256xf32> to vector<1x256xf32>
    %98 = arith.subf %94, %97 : vector<1x256xf32>
    %cst_36 = arith.constant 0.000000e+00 : f32
    %99 = vector.broadcast %cst_36 : f32 to vector<1x256xf32>
    %100 = arith.select %10, %98, %99 : vector<1x256xi1>, vector<1x256xf32>
    %c0_37 = arith.constant 0 : index
    %c0_38 = arith.constant 0 : index
    %c0_39 = arith.constant 0 : index
    %101 = vector.load %arg7[%c0_37, %c0_38, %c0_39] : memref<1x2x256xf32, #tpu.memory_space<vmem>>, vector<1x2x256xf32>
    %102 = vector.shape_cast %101 : vector<1x2x256xf32> to vector<2x256xf32>
    %c0_40 = arith.constant 0 : index
    %c0_41 = arith.constant 0 : index
    %c0_42 = arith.constant 0 : index
    %103 = vector.load %arg8[%c0_40, %c0_41, %c0_42] : memref<1x2x256xf32, #tpu.memory_space<vmem>>, vector<1x2x256xf32>
    %104 = vector.shape_cast %103 : vector<1x2x256xf32> to vector<2x256xf32>
    %105 = math.floor %102 : vector<2x256xf32>
    %106 = arith.subf %105, %102 : vector<2x256xf32>
    %107 = math.ceil %102 : vector<2x256xf32>
    %108 = arith.subf %107, %102 : vector<2x256xf32>
    %109 = vector.extract_strided_slice %108 {offsets = [0, 0], sizes = [1, 256], strides = [1, 1]} : vector<2x256xf32> to vector<1x256xf32>
    %110 = vector.extract_strided_slice %106 {offsets = [1, 0], sizes = [1, 256], strides = [1, 1]} : vector<2x256xf32> to vector<1x256xf32>
    %111 = tpu.concatenate %109, %110 in 0 : vector<1x256xf32>, vector<1x256xf32> -> vector<2x256xf32>
    %112 = vector.extract_strided_slice %106 {offsets = [0, 0], sizes = [1, 256], strides = [1, 1]} : vector<2x256xf32> to vector<1x256xf32>
    %113 = vector.extract_strided_slice %108 {offsets = [1, 0], sizes = [1, 256], strides = [1, 1]} : vector<2x256xf32> to vector<1x256xf32>
    %114 = tpu.concatenate %112, %113 in 0 : vector<1x256xf32>, vector<1x256xf32> -> vector<2x256xf32>
    %115 = arith.cmpf olt, %49, %32 : vector<1x256xf32>
    %116 = arith.extui %115 : vector<1x256xi1> to vector<1x256xi32>
    %117 = arith.sitofp %116 : vector<1x256xi32> to vector<1x256xf32>
    %118 = arith.subf %106, %104 : vector<2x256xf32>
    %119 = vector.broadcast %117 : vector<1x256xf32> to vector<2x256xf32>
    %120 = arith.mulf %119, %118 : vector<2x256xf32>
    %121 = arith.addf %104, %120 : vector<2x256xf32>
    %122 = arith.minimumf %49, %32 : vector<1x256xf32>
    %123 = arith.cmpf olt, %66, %122 : vector<1x256xf32>
    %124 = arith.extui %123 : vector<1x256xi1> to vector<1x256xi32>
    %125 = arith.sitofp %124 : vector<1x256xi32> to vector<1x256xf32>
    %126 = arith.subf %111, %121 : vector<2x256xf32>
    %127 = vector.broadcast %125 : vector<1x256xf32> to vector<2x256xf32>
    %128 = arith.mulf %127, %126 : vector<2x256xf32>
    %129 = arith.addf %121, %128 : vector<2x256xf32>
    %130 = arith.minimumf %66, %122 : vector<1x256xf32>
    %131 = arith.cmpf olt, %83, %130 : vector<1x256xf32>
    %132 = arith.extui %131 : vector<1x256xi1> to vector<1x256xi32>
    %133 = arith.sitofp %132 : vector<1x256xi32> to vector<1x256xf32>
    %134 = arith.subf %114, %129 : vector<2x256xf32>
    %135 = vector.broadcast %133 : vector<1x256xf32> to vector<2x256xf32>
    %136 = arith.mulf %135, %134 : vector<2x256xf32>
    %137 = arith.addf %129, %136 : vector<2x256xf32>
    %138 = arith.minimumf %83, %130 : vector<1x256xf32>
    %139 = arith.cmpf olt, %100, %138 : vector<1x256xf32>
    %140 = arith.extui %139 : vector<1x256xi1> to vector<1x256xi32>
    %141 = arith.sitofp %140 : vector<1x256xi32> to vector<1x256xf32>
    %142 = arith.subf %108, %137 : vector<2x256xf32>
    %143 = vector.broadcast %141 : vector<1x256xf32> to vector<2x256xf32>
    %144 = arith.mulf %143, %142 : vector<2x256xf32>
    %145 = arith.addf %137, %144 : vector<2x256xf32>
    %146 = arith.minimumf %100, %138 : vector<1x256xf32>
    %147 = arith.cmpf ogt, %32, %146 : vector<1x256xf32>
    %148 = arith.extui %147 : vector<1x256xi1> to vector<1x256xi32>
    %149 = arith.sitofp %148 : vector<1x256xi32> to vector<1x256xf32>
    %cst_43 = arith.constant 3.000000e-01 : f32
    %150 = vector.broadcast %cst_43 : f32 to vector<1x256xf32>
    %151 = arith.mulf %149, %150 : vector<1x256xf32>
    %cst_44 = arith.constant 1.000000e+00 : f32
    %152 = vector.broadcast %cst_44 : f32 to vector<1x256xf32>
    %153 = arith.addf %151, %152 : vector<1x256xf32>
    %154 = arith.mulf %32, %153 : vector<1x256xf32>
    %155 = arith.subf %145, %104 : vector<2x256xf32>
    %156 = math.absf %155 : vector<2x256xf32>
    %cst_45 = arith.constant 1.000000e+00 : f32
    %157 = vector.broadcast %cst_45 : f32 to vector<2x256xf32>
    %158 = arith.cmpf olt, %156, %157 : vector<2x256xf32>
    %cst_46 = arith.constant 5.000000e-01 : f32
    %159 = vector.broadcast %cst_46 : f32 to vector<2x256xf32>
    %160 = arith.mulf %159, %155 : vector<2x256xf32>
    %161 = arith.mulf %160, %155 : vector<2x256xf32>
    %cst_47 = arith.constant 5.000000e-01 : f32
    %162 = vector.broadcast %cst_47 : f32 to vector<2x256xf32>
    %163 = arith.subf %156, %162 : vector<2x256xf32>
    %164 = arith.select %158, %161, %163 : vector<2x256xi1>, vector<2x256xf32>
    %cst_48 = arith.constant 0.000000e+00 : f32
    %165 = vector.shape_cast %7 : vector<1x256xi1> to vector<1x256xi1>
    %166 = vector.broadcast %165 : vector<1x256xi1> to vector<2x256xi1>
    %167 = vector.broadcast %cst_48 : f32 to vector<2x256xf32>
    %168 = arith.select %166, %164, %167 : vector<2x256xi1>, vector<2x256xf32>
    %169 = vector.shape_cast %154 : vector<1x256xf32> to vector<1x1x256xf32>
    %cst_49 = arith.constant dense<0.000000e+00> : vector<1xf32>
    %170 = vector.multi_reduction <add>, %169, %cst_49 [1, 2] : vector<1x1x256xf32> to vector<1xf32>
    %171 = vector.shape_cast %170 : vector<1xf32> to vector<1x1x1xf32>
    %172 = vector.extract %171[0, 0, 0] : f32 from vector<1x1x1xf32>
    %173 = vector.broadcast %172 : f32 to vector<1x1x1x128xf32>
    %c0_50 = arith.constant 0 : index
    %c0_51 = arith.constant 0 : index
    %c0_52 = arith.constant 0 : index
    %c0_53 = arith.constant 0 : index
    %174 = vector.load %arg10[%c0_50, %c0_51, %c0_52, %c0_53] : memref<1x1x1x128xf32, #tpu.memory_space<vmem>>, vector<1x1x1x128xf32>
    tpu.vector_store %arg10[%c0_50, %c0_51, %c0_52, %c0_53], %173 {strides = array<i32>} : memref<1x1x1x128xf32, #tpu.memory_space<vmem>>, vector<1x1x1x128xf32>,
    %175 = vector.shape_cast %168 : vector<2x256xf32> to vector<1x2x256xf32>
    %cst_54 = arith.constant dense<0.000000e+00> : vector<1xf32>
    %176 = vector.multi_reduction <add>, %175, %cst_54 [1, 2] : vector<1x2x256xf32> to vector<1xf32>
    %177 = vector.shape_cast %176 : vector<1xf32> to vector<1x1x1xf32>
    %178 = vector.extract %177[0, 0, 0] : f32 from vector<1x1x1xf32>
    %179 = vector.broadcast %178 : f32 to vector<1x1x1x128xf32>
    %c0_55 = arith.constant 0 : index
    %c0_56 = arith.constant 0 : index
    %c0_57 = arith.constant 0 : index
    %c0_58 = arith.constant 0 : index
    %180 = vector.load %arg11[%c0_55, %c0_56, %c0_57, %c0_58] : memref<1x1x1x128xf32, #tpu.memory_space<vmem>>, vector<1x1x1x128xf32>
    tpu.vector_store %arg11[%c0_55, %c0_56, %c0_57, %c0_58], %179 {strides = array<i32>} : memref<1x1x1x128xf32, #tpu.memory_space<vmem>>, vector<1x1x1x128xf32>,
    return
  }
  func.func @transform_0(%arg0: i32, %arg1: i32) -> (i32, i32, i32) {
    %c0_i32 = arith.constant 0 : i32
    %c0_i32_0 = arith.constant 0 : i32
    return %arg1, %c0_i32, %arg0 : i32, i32, i32
  }
  func.func @transform_1(%arg0: i32, %arg1: i32) -> (i32, i32, i32) {
    %c0_i32 = arith.constant 0 : i32
    %c0_i32_0 = arith.constant 0 : i32
    return %arg1, %c0_i32, %arg0 : i32, i32, i32
  }
  func.func @transform_2(%arg0: i32, %arg1: i32) -> (i32, i32, i32) {
    %c0_i32 = arith.constant 0 : i32
    %c0_i32_0 = arith.constant 0 : i32
    return %arg1, %c0_i32, %arg0 : i32, i32, i32
  }
  func.func @transform_3(%arg0: i32, %arg1: i32) -> (i32, i32, i32) {
    %c0_i32 = arith.constant 0 : i32
    %c0_i32_0 = arith.constant 0 : i32
    return %arg1, %c0_i32, %arg0 : i32, i32, i32
  }
  func.func @transform_4(%arg0: i32, %arg1: i32) -> (i32, i32, i32) {
    %c0_i32 = arith.constant 0 : i32
    %c0_i32_0 = arith.constant 0 : i32
    return %arg1, %c0_i32, %arg0 : i32, i32, i32
  }
  func.func @transform_5(%arg0: i32, %arg1: i32) -> (i32, i32, i32) {
    %c0_i32 = arith.constant 0 : i32
    %c0_i32_0 = arith.constant 0 : i32
    return %arg1, %c0_i32, %arg0 : i32, i32, i32
  }
  func.func @transform_6(%arg0: i32, %arg1: i32) -> (i32, i32, i32) {
    %c0_i32 = arith.constant 0 : i32
    %c0_i32_0 = arith.constant 0 : i32
    return %arg1, %c0_i32, %arg0 : i32, i32, i32
  }
  func.func @transform_7(%arg0: i32, %arg1: i32) -> (i32, i32, i32) {
    %c0_i32 = arith.constant 0 : i32
    %c0_i32_0 = arith.constant 0 : i32
    return %arg1, %c0_i32, %arg0 : i32, i32, i32
  }
  func.func @transform_8(%arg0: i32, %arg1: i32) -> (i32, i32, i32, i32) {
    %c0_i32 = arith.constant 0 : i32
    %c0_i32_0 = arith.constant 0 : i32
    %c0_i32_1 = arith.constant 0 : i32
    return %arg0, %arg1, %c0_i32, %c0_i32_0 : i32, i32, i32, i32
  }
  func.func @transform_9(%arg0: i32, %arg1: i32) -> (i32, i32, i32, i32) {
    %c0_i32 = arith.constant 0 : i32
    %c0_i32_0 = arith.constant 0 : i32
    %c0_i32_1 = arith.constant 0 : i32
    return %arg0, %arg1, %c0_i32, %c0_i32_0 : i32, i32, i32, i32
  }
}

</mosaic_0001>

<llo_original>
// kernel: offset_losses_forward.1
$region0: #{offset_losses_forward.1}
  #allocation0 [shape = 'u32[]', space=smem, size = 0x4, offset = 0x4, fixed_abs, tag = 'smem constant byte address 0x4 - core index']
  #allocation1 [shape = 'u32[144,128]{1,0:T(1,128)}', space=vmem, size = 0x12000, scoped, tag = 'internal scratch']
  %s0 = inlined_call_operand.vmem [shape: f32[2,4,256], index: 0, kind: input, shape index: {}]
  %s1 = inlined_call_operand.vmem [shape: f32[2,4,256], index: 1, kind: input, shape index: {}]
  %s2 = inlined_call_operand.vmem [shape: f32[2,4,256], index: 2, kind: input, shape index: {}]
  %s3 = inlined_call_operand.vmem [shape: f32[2,4,256], index: 3, kind: input, shape index: {}]
  %s4 = inlined_call_operand.vmem [shape: f32[2,4,256], index: 4, kind: input, shape index: {}]
  %s5 = inlined_call_operand.vmem [shape: f32[2,2,256], index: 5, kind: input, shape index: {}]
  %s6 = inlined_call_operand.vmem [shape: f32[2,2,256], index: 6, kind: input, shape index: {}]
  %s7 = inlined_call_operand.vmem [shape: s32[2,1,256], index: 7, kind: input, shape index: {}]
  %s8 = inlined_call_operand.vmem [shape: f32[1,2,1,128], index: 8, kind: output, shape index: {0}]
  %s9 = inlined_call_operand.vmem [shape: f32[1,2,1,128], index: 9, kind: output, shape index: {1}]
  %10 = xla_tuple %s8, %s9
  %s11 = sld [smem:[#allocation0]]
  $region73: #{offset_losses_forward.1} parent=0
    _
  %s13 = ssub.s32 1, %s11
  %s14 = scalar_select 0, %s13, %s11
  loop: start=0, step=1, limit=4
  $region2: #{offset_losses_forward.1} parent=0 // loop_pre_header
    _
  $region3: #{offset_losses_forward.1} parent=0 // loop_header
    %s16 = sphi 0, %s20
    %p17 = scmp.ge.s32.totalorder %s16, 4
    %s23 = sphi 0, %s35
    %s24 = sphi 0, %s31
    %s25 = sphi 0, %s23
    %s26 = sphi 0, %s24
    %s27 = sphi 0, %s25
    %s28 = sphi 0, %s26
    %s40 = sphi 0, %s42
    %s43 = sphi 0, %s40
    %s44 = sphi 0, %s43
    %s60 = sphi 0, %s44
    %s68 = sphi 0, %s70
    %s71 = sphi 0, %s68
    %s72 = sphi 0, %s71
    %s88 = sphi 0, %s72
    %s96 = sphi 0, %s98
    %s99 = sphi 0, %s96
    %s100 = sphi 0, %s99
    %s116 = sphi 0, %s100
    %s124 = sphi 0, %s126
    %s127 = sphi 0, %s124
    %s128 = sphi 0, %s127
    %s144 = sphi 0, %s128
    %s152 = sphi 0, %s154
    %s155 = sphi 0, %s152
    %s156 = sphi 0, %s155
    %s172 = sphi 0, %s156
    %s180 = sphi 0, %s182
    %s183 = sphi 0, %s180
    %s184 = sphi 0, %s183
    %s200 = sphi 0, %s184
    %s208 = sphi 0, %s210
    %s211 = sphi 0, %s208
    %s212 = sphi 0, %s211
    %s228 = sphi 0, %s212
    %s236 = sphi 0, %s238
    %s239 = sphi 0, %s236
    %s240 = sphi 0, %s239
    %s256 = sphi 0, %s240
    %s264 = sphi 0, %s266
    %s267 = sphi 0, %s264
    %s268 = sphi 0, %s267
    %s284 = sphi 0, %s268
    %s292 = sphi 0, %s294
    %s295 = sphi 0, %s292
    %s296 = sphi 0, %s295
    %s312 = sphi 0, %s296
  $region4: #{offset_losses_forward.1} parent=0 // loop_header_branch
    %19 = sbr.rel (%p17) target = $region8
  $region5: #{offset_losses_forward.1} parent=0 // loop_body
    %s21 = ssub.s32 %s16, 1
    %s22 = ssub.s32 %s16, 2
    %s29 = sadd.s32 1, %s24
    %p30 = scmp.ge.s32.totalorder %s29, 2
    %s31 = scalar_select %p30, 0, %s29
    %s32 = sadd.s32 1, %s23
    %s33 = scalar_select %p30, %s32, %s23
    %p34 = scmp.ge.s32.totalorder %s33, 1
    %s35 = scalar_select %p34, 0, %s33
    %s36 = ssub.s32 %s24, %s31
    %s37 = ssub.s32 %s23, %s35
    %s38 = sor.u32 %s36, %s37
    %p39 = scmp.eq.s32.totalorder %s38, 0
    %s41 = sadd.s32 %s40, 1
    %s42 = scalar_select %p39, %s40, %s41
    %p45 = pneg %p39
    %p46 = scmp.eq.s32.totalorder %s16, 1
    %p47 = por %p45, %p46
    %p48 = scmp.ne.s32.totalorder %s40, %s43
    %p49 = scmp.eq.s32.totalorder %s16, 0
    %p50 = por %p48, %p49
    %p51 = scmp.ne.s32.totalorder %s40, %s43
    %p52 = scmp.eq.s32.totalorder %s21, 1
    %p53 = por %p51, %p52
    %p54 = scmp.ne.s32.totalorder %s43, %s44
    %p55 = scmp.eq.s32.totalorder %s21, 0
    %p56 = por %p54, %p55
    %p57 = scmp.ne.s32.totalorder %s43, %s44
    %p58 = scmp.eq.s32.totalorder %s22, 1
    %p59 = por %p57, %p58
    %p61 = scmp.ne.s32.totalorder %s44, %s60
    %p62 = scmp.eq.s32.totalorder %s22, 0
    %p63 = por %p61, %p62
    %s64 = ssub.s32 %s24, %s31
    %s65 = ssub.s32 %s23, %s35
    %s66 = sor.u32 %s64, %s65
    %p67 = scmp.eq.s32.totalorder %s66, 0
    %s69 = sadd.s32 %s68, 1
    %s70 = scalar_select %p67, %s68, %s69
    %p73 = pneg %p67
    %p74 = scmp.eq.s32.totalorder %s16, 1
    %p75 = por %p73, %p74
    %p76 = scmp.ne.s32.totalorder %s68, %s71
    %p77 = scmp.eq.s32.totalorder %s16, 0
    %p78 = por %p76, %p77
    %p79 = scmp.ne.s32.totalorder %s68, %s71
    %p80 = scmp.eq.s32.totalorder %s21, 1
    %p81 = por %p79, %p80
    %p82 = scmp.ne.s32.totalorder %s71, %s72
    %p83 = scmp.eq.s32.totalorder %s21, 0
    %p84 = por %p82, %p83
    %p85 = scmp.ne.s32.totalorder %s71, %s72
    %p86 = scmp.eq.s32.totalorder %s22, 1
    %p87 = por %p85, %p86
    %p89 = scmp.ne.s32.totalorder %s72, %s88
    %p90 = scmp.eq.s32.totalorder %s22, 0
    %p91 = por %p89, %p90
    %s92 = ssub.s32 %s24, %s31
    %s93 = ssub.s32 %s23, %s35
    %s94 = sor.u32 %s92, %s93
    %p95 = scmp.eq.s32.totalorder %s94, 0
    %s97 = sadd.s32 %s96, 1
    %s98 = scalar_select %p95, %s96, %s97
    %p101 = pneg %p95
    %p102 = scmp.eq.s32.totalorder %s16, 1
    %p103 = por %p101, %p102
    %p104 = scmp.ne.s32.totalorder %s96, %s99
    %p105 = scmp.eq.s32.totalorder %s16, 0
    %p106 = por %p104, %p105
    %p107 = scmp.ne.s32.totalorder %s96, %s99
    %p108 = scmp.eq.s32.totalorder %s21, 1
    %p109 = por %p107, %p108
    %p110 = scmp.ne.s32.totalorder %s99, %s100
    %p111 = scmp.eq.s32.totalorder %s21, 0
    %p112 = por %p110, %p111
    %p113 = scmp.ne.s32.totalorder %s99, %s100
    %p114 = scmp.eq.s32.totalorder %s22, 1
    %p115 = por %p113, %p114
    %p117 = scmp.ne.s32.totalorder %s100, %s116
    %p118 = scmp.eq.s32.totalorder %s22, 0
    %p119 = por %p117, %p118
    %s120 = ssub.s32 %s24, %s31
    %s121 = ssub.s32 %s23, %s35
    %s122 = sor.u32 %s120, %s121
    %p123 = scmp.eq.s32.totalorder %s122, 0
    %s125 = sadd.s32 %s124, 1
    %s126 = scalar_select %p123, %s124, %s125
    %p129 = pneg %p123
    %p130 = scmp.eq.s32.totalorder %s16, 1
    %p131 = por %p129, %p130
    %p132 = scmp.ne.s32.totalorder %s124, %s127
    %p133 = scmp.eq.s32.totalorder %s16, 0
    %p134 = por %p132, %p133
    %p135 = scmp.ne.s32.totalorder %s124, %s127
    %p136 = scmp.eq.s32.totalorder %s21, 1
    %p137 = por %p135, %p136
    %p138 = scmp.ne.s32.totalorder %s127, %s128
    %p139 = scmp.eq.s32.totalorder %s21, 0
    %p140 = por %p138, %p139
    %p141 = scmp.ne.s32.totalorder %s127, %s128
    %p142 = scmp.eq.s32.totalorder %s22, 1
    %p143 = por %p141, %p142
    %p145 = scmp.ne.s32.totalorder %s128, %s144
    %p146 = scmp.eq.s32.totalorder %s22, 0
    %p147 = por %p145, %p146
    %s148 = ssub.s32 %s24, %s31
    %s149 = ssub.s32 %s23, %s35
    %s150 = sor.u32 %s148, %s149
    %p151 = scmp.eq.s32.totalorder %s150, 0
    %s153 = sadd.s32 %s152, 1
    %s154 = scalar_select %p151, %s152, %s153
    %p157 = pneg %p151
    %p158 = scmp.eq.s32.totalorder %s16, 1
    %p159 = por %p157, %p158
    %p160 = scmp.ne.s32.totalorder %s152, %s155
    %p161 = scmp.eq.s32.totalorder %s16, 0
    %p162 = por %p160, %p161
    %p163 = scmp.ne.s32.totalorder %s152, %s155
    %p164 = scmp.eq.s32.totalorder %s21, 1
    %p165 = por %p163, %p164
    %p166 = scmp.ne.s32.totalorder %s155, %s156
    %p167 = scmp.eq.s32.totalorder %s21, 0
    %p168 = por %p166, %p167
    %p169 = scmp.ne.s32.totalorder %s155, %s156
    %p170 = scmp.eq.s32.totalorder %s22, 1
    %p171 = por %p169, %p170
    %p173 = scmp.ne.s32.totalorder %s156, %s172
    %p174 = scmp.eq.s32.totalorder %s22, 0
    %p175 = por %p173, %p174
    %s176 = ssub.s32 %s24, %s31
    %s177 = ssub.s32 %s23, %s35
    %s178 = sor.u32 %s176, %s177
    %p179 = scmp.eq.s32.totalorder %s178, 0
    %s181 = sadd.s32 %s180, 1
    %s182 = scalar_select %p179, %s180, %s181
    %p185 = pneg %p179
    %p186 = scmp.eq.s32.totalorder %s16, 1
    %p187 = por %p185, %p186
    %p188 = scmp.ne.s32.totalorder %s180, %s183
    %p189 = scmp.eq.s32.totalorder %s16, 0
    %p190 = por %p188, %p189
    %p191 = scmp.ne.s32.totalorder %s180, %s183
    %p192 = scmp.eq.s32.totalorder %s21, 1
    %p193 = por %p191, %p192
    %p194 = scmp.ne.s32.totalorder %s183, %s184
    %p195 = scmp.eq.s32.totalorder %s21, 0
    %p196 = por %p194, %p195
    %p197 = scmp.ne.s32.totalorder %s183, %s184
    %p198 = scmp.eq.s32.totalorder %s22, 1
    %p199 = por %p197, %p198
    %p201 = scmp.ne.s32.totalorder %s184, %s200
    %p202 = scmp.eq.s32.totalorder %s22, 0
    %p203 = por %p201, %p202
    %s204 = ssub.s32 %s24, %s31
    %s205 = ssub.s32 %s23, %s35
    %s206 = sor.u32 %s204, %s205
    %p207 = scmp.eq.s32.totalorder %s206, 0
    %s209 = sadd.s32 %s208, 1
    %s210 = scalar_select %p207, %s208, %s209
    %p213 = pneg %p207
    %p214 = scmp.eq.s32.totalorder %s16, 1
    %p215 = por %p213, %p214
    %p216 = scmp.ne.s32.totalorder %s208, %s211
    %p217 = scmp.eq.s32.totalorder %s16, 0
    %p218 = por %p216, %p217
    %p219 = scmp.ne.s32.totalorder %s208, %s211
    %p220 = scmp.eq.s32.totalorder %s21, 1
    %p221 = por %p219, %p220
    %p222 = scmp.ne.s32.totalorder %s211, %s212
    %p223 = scmp.eq.s32.totalorder %s21, 0
    %p224 = por %p222, %p223
    %p225 = scmp.ne.s32.totalorder %s211, %s212
    %p226 = scmp.eq.s32.totalorder %s22, 1
    %p227 = por %p225, %p226
    %p229 = scmp.ne.s32.totalorder %s212, %s228
    %p230 = scmp.eq.s32.totalorder %s22, 0
    %p231 = por %p229, %p230
    %s232 = ssub.s32 %s24, %s31
    %s233 = ssub.s32 %s23, %s35
    %s234 = sor.u32 %s232, %s233
    %p235 = scmp.eq.s32.totalorder %s234, 0
    %s237 = sadd.s32 %s236, 1
    %s238 = scalar_select %p235, %s236, %s237
    %p241 = pneg %p235
    %p242 = scmp.eq.s32.totalorder %s16, 1
    %p243 = por %p241, %p242
    %p244 = scmp.ne.s32.totalorder %s236, %s239
    %p245 = scmp.eq.s32.totalorder %s16, 0
    %p246 = por %p244, %p245
    %p247 = scmp.ne.s32.totalorder %s236, %s239
    %p248 = scmp.eq.s32.totalorder %s21, 1
    %p249 = por %p247, %p248
    %p250 = scmp.ne.s32.totalorder %s239, %s240
    %p251 = scmp.eq.s32.totalorder %s21, 0
    %p252 = por %p250, %p251
    %p253 = scmp.ne.s32.totalorder %s239, %s240
    %p254 = scmp.eq.s32.totalorder %s22, 1
    %p255 = por %p253, %p254
    %p257 = scmp.ne.s32.totalorder %s240, %s256
    %p258 = scmp.eq.s32.totalorder %s22, 0
    %p259 = por %p257, %p258
    %s260 = ssub.s32 %s23, %s35
    %s261 = ssub.s32 %s24, %s31
    %s262 = sor.u32 %s260, %s261
    %p263 = scmp.eq.s32.totalorder %s262, 0
    %s265 = sadd.s32 %s264, 1
    %s266 = scalar_select %p263, %s264, %s265
    %p269 = pneg %p263
    %p270 = scmp.eq.s32.totalorder %s16, 1
    %p271 = por %p269, %p270
    %p272 = scmp.ne.s32.totalorder %s264, %s267
    %p273 = scmp.eq.s32.totalorder %s16, 0
    %p274 = por %p272, %p273
    %p275 = scmp.ne.s32.totalorder %s264, %s267
    %p276 = scmp.eq.s32.totalorder %s21, 1
    %p277 = por %p275, %p276
    %p278 = scmp.ne.s32.totalorder %s267, %s268
    %p279 = scmp.eq.s32.totalorder %s21, 0
    %p280 = por %p278, %p279
    %p281 = scmp.ne.s32.totalorder %s267, %s268
    %p282 = scmp.eq.s32.totalorder %s22, 1
    %p283 = por %p281, %p282
    %p285 = scmp.ne.s32.totalorder %s268, %s284
    %p286 = scmp.eq.s32.totalorder %s22, 0
    %p287 = por %p285, %p286
    %s288 = ssub.s32 %s23, %s35
    %s289 = ssub.s32 %s24, %s31
    %s290 = sor.u32 %s288, %s289
    %p291 = scmp.eq.s32.totalorder %s290, 0
    %s293 = sadd.s32 %s292, 1
    %s294 = scalar_select %p291, %s292, %s293
    %p297 = pneg %p291
    %p298 = scmp.eq.s32.totalorder %s16, 1
    %p299 = por %p297, %p298
    %p300 = scmp.ne.s32.totalorder %s292, %s295
    %p301 = scmp.eq.s32.totalorder %s16, 0
    %p302 = por %p300, %p301
    %p303 = scmp.ne.s32.totalorder %s292, %s295
    %p304 = scmp.eq.s32.totalorder %s21, 1
    %p305 = por %p303, %p304
    %p306 = scmp.ne.s32.totalorder %s295, %s296
    %p307 = scmp.eq.s32.totalorder %s21, 0
    %p308 = por %p306, %p307
    %p309 = scmp.ne.s32.totalorder %s295, %s296
    %p310 = scmp.eq.s32.totalorder %s22, 1
    %p311 = por %p309, %p310
    %p313 = scmp.ne.s32.totalorder %s296, %s312
    %p314 = scmp.eq.s32.totalorder %s22, 0
    %p315 = por %p313, %p314
    %p316 = scmp.le.s32.totalorder 1, %s16
    %p317 = scmp.lt.s32.totalorder %s16, 3
    %p318 = pnand %p316, %p317
    %p319 = pneg %p318
    // Predicated region
    $region9: #{offset_losses_forward.1} parent=5 // pred_check
      _
    $region10: #{offset_losses_forward.1} parent=5 // pred_check_branch
      %321 = sbr.rel (%p318) target = $region12
    $region11: #{offset_losses_forward.1} parent=5 // pred_region
      %s322 = ssub.s32 %s16, 1
    $region12: #{offset_losses_forward.1} parent=5 // pred_fallthru
      _
    %p323 = scmp.lt.s32.totalorder %s16, 2
    // Predicated region
    $region13: #{offset_losses_forward.1} parent=5 // pred_check
      %p324 = pneg %p323
    $region14: #{offset_losses_forward.1} parent=5 // pred_check_branch
      %326 = sbr.rel (%p324) target = $region16
    $region15: #{offset_losses_forward.1} parent=5 // pred_region
      // Predicated region
      $region17: #{offset_losses_forward.1} parent=15 // pred_check
        %p327 = pneg %p50
      $region18: #{offset_losses_forward.1} parent=15 // pred_check_branch
        %329 = sbr.rel (%p327) target = $region20
      $region19: #{offset_losses_forward.1} parent=15 // pred_region
        %s330 = smul.u32 2, %s23
        %p331 = scmp.lt.s32.totalorder %s24, 1
        %s332 = scalar_select %p331, %s24, 1
        %p333 = scmp.lt.s32.totalorder %s330, 1
        %s334 = scalar_select %p333, %s330, 1
        %s335 = smul.addr %s332, 2
        %s336 = sadd.s32 %s334, %s335
        %s337 = smul.addr %s336, 4
        %s338 = scalar_lea.vmem %s0, %s337
        %s339 = smul.u32 2, %s23
      $region20: #{offset_losses_forward.1} parent=15 // pred_fallthru
        _
      // Predicated region
      $region21: #{offset_losses_forward.1} parent=15 // pred_check
        %p340 = pneg %p78
      $region22: #{offset_losses_forward.1} parent=15 // pred_check_branch
        %342 = sbr.rel (%p340) target = $region24
      $region23: #{offset_losses_forward.1} parent=15 // pred_region
        %s343 = smul.u32 2, %s23
        %p344 = scmp.lt.s32.totalorder %s24, 1
        %s345 = scalar_select %p344, %s24, 1
        %p346 = scmp.lt.s32.totalorder %s343, 1
        %s347 = scalar_select %p346, %s343, 1
        %s348 = smul.addr %s345, 2
        %s349 = sadd.s32 %s347, %s348
        %s350 = smul.addr %s349, 4
        %s351 = scalar_lea.vmem %s1, %s350
        %s352 = smul.u32 2, %s23
      $region24: #{offset_losses_forward.1} parent=15 // pred_fallthru
        _
      // Predicated region
      $region25: #{offset_losses_forward.1} parent=15 // pred_check
        %p353 = pneg %p106
      $region26: #{offset_losses_forward.1} parent=15 // pred_check_branch
        %355 = sbr.rel (%p353) target = $region28
      $region27: #{offset_losses_forward.1} parent=15 // pred_region
        %s356 = smul.u32 2, %s23
        %p357 = scmp.lt.s32.totalorder %s24, 1
        %s358 = scalar_select %p357, %s24, 1
        %p359 = scmp.lt.s32.totalorder %s356, 1
        %s360 = scalar_select %p359, %s356, 1
        %s361 = smul.addr %s358, 2
        %s362 = sadd.s32 %s360, %s361
        %s363 = smul.addr %s362, 4
        %s364 = scalar_lea.vmem %s2, %s363
        %s365 = smul.u32 2, %s23
      $region28: #{offset_losses_forward.1} parent=15 // pred_fallthru
        _
      // Predicated region
      $region29: #{offset_losses_forward.1} parent=15 // pred_check
        %p366 = pneg %p134
      $region30: #{offset_losses_forward.1} parent=15 // pred_check_branch
        %368 = sbr.rel (%p366) target = $region32
      $region31: #{offset_losses_forward.1} parent=15 // pred_region
        %s369 = smul.u32 2, %s23
        %p370 = scmp.lt.s32.totalorder %s24, 1
        %s371 = scalar_select %p370, %s24, 1
        %p372 = scmp.lt.s32.totalorder %s369, 1
        %s373 = scalar_select %p372, %s369, 1
        %s374 = smul.addr %s371, 2
        %s375 = sadd.s32 %s373, %s374
        %s376 = smul.addr %s375, 4
        %s377 = scalar_lea.vmem %s3, %s376
        %s378 = smul.u32 2, %s23
      $region32: #{offset_losses_forward.1} parent=15 // pred_fallthru
        _
      // Predicated region
      $region33: #{offset_losses_forward.1} parent=15 // pred_check
        %p379 = pneg %p162
      $region34: #{offset_losses_forward.1} parent=15 // pred_check_branch
        %381 = sbr.rel (%p379) target = $region36
      $region35: #{offset_losses_forward.1} parent=15 // pred_region
        %s382 = smul.u32 2, %s23
        %p383 = scmp.lt.s32.totalorder %s24, 1
        %s384 = scalar_select %p383, %s24, 1
        %p385 = scmp.lt.s32.totalorder %s382, 1
        %s386 = scalar_select %p385, %s382, 1
        %s387 = smul.addr %s384, 2
        %s388 = sadd.s32 %s386, %s387
        %s389 = smul.addr %s388, 4
        %s390 = scalar_lea.vmem %s4, %s389
        %s391 = smul.u32 2, %s23
      $region36: #{offset_losses_forward.1} parent=15 // pred_fallthru
        _
      // Predicated region
      $region37: #{offset_losses_forward.1} parent=15 // pred_check
        %p392 = pneg %p190
      $region38: #{offset_losses_forward.1} parent=15 // pred_check_branch
        %394 = sbr.rel (%p392) target = $region40
      $region39: #{offset_losses_forward.1} parent=15 // pred_region
        %s395 = smul.u32 2, %s23
        %p396 = scmp.lt.s32.totalorder %s24, 1
        %s397 = scalar_select %p396, %s24, 1
        %p398 = scmp.lt.s32.totalorder %s395, 1
        %s399 = scalar_select %p398, %s395, 1
        %s400 = smul.addr %s397, 2
        %s401 = sadd.s32 %s399, %s400
        %s402 = smul.addr %s401, 2
        %s403 = scalar_lea.vmem %s5, %s402
        %s404 = smul.u32 2, %s23
      $region40: #{offset_losses_forward.1} parent=15 // pred_fallthru
        _
      // Predicated region
      $region41: #{offset_losses_forward.1} parent=15 // pred_check
        %p405 = pneg %p218
      $region42: #{offset_losses_forward.1} parent=15 // pred_check_branch
        %407 = sbr.rel (%p405) target = $region44
      $region43: #{offset_losses_forward.1} parent=15 // pred_region
        %s408 = smul.u32 2, %s23
        %p409 = scmp.lt.s32.totalorder %s24, 1
        %s410 = scalar_select %p409, %s24, 1
        %p411 = scmp.lt.s32.totalorder %s408, 1
        %s412 = scalar_select %p411, %s408, 1
        %s413 = smul.addr %s410, 2
        %s414 = sadd.s32 %s412, %s413
        %s415 = smul.addr %s414, 2
        %s416 = scalar_lea.vmem %s6, %s415
        %s417 = smul.u32 2, %s23
      $region44: #{offset_losses_forward.1} parent=15 // pred_fallthru
        _
      // Predicated region
      $region45: #{offset_losses_forward.1} parent=15 // pred_check
        %p418 = pneg %p246
      $region46: #{offset_losses_forward.1} parent=15 // pred_check_branch
        %420 = sbr.rel (%p418) target = $region48
      $region47: #{offset_losses_forward.1} parent=15 // pred_region
        %s421 = smul.u32 2, %s23
        %p422 = scmp.lt.s32.totalorder %s24, 1
        %s423 = scalar_select %p422, %s24, 1
        %p424 = scmp.lt.s32.totalorder %s421, 1
        %s425 = scalar_select %p424, %s421, 1
        %s426 = smul.addr %s423, 2
        %s427 = sadd.s32 %s425, %s426
        %s428 = scalar_lea.vmem %s7, %s427
        %s429 = smul.u32 2, %s23
      $region48: #{offset_losses_forward.1} parent=15 // pred_fallthru
        _
    $region16: #{offset_losses_forward.1} parent=5 // pred_fallthru
      _
    %p430 = scmp.le.s32.totalorder 1, %s16
    %p431 = scmp.lt.s32.totalorder %s16, 3
    %p432 = pnand %p430, %p431
    %p433 = pneg %p432
    // Predicated region
    $region49: #{offset_losses_forward.1} parent=5 // pred_check
      _
    $region50: #{offset_losses_forward.1} parent=5 // pred_check_branch
      %435 = sbr.rel (%p432) target = $region52
    $region51: #{offset_losses_forward.1} parent=5 // pred_region
      %s436 = ssub.s32 %s16, 1
      %s437 = smul.u32 2, %s25
      %p438 = scmp.lt.s32.totalorder %s26, 1
      %s439 = scalar_select %p438, %s26, 1
      %p440 = scmp.lt.s32.totalorder %s437, 1
      %s441 = scalar_select %p440, %s437, 1
      %s442 = smul.addr %s439, 2
      %s443 = sadd.s32 %s441, %s442
      %s444 = smul.addr %s443, 4
      %s445 = scalar_lea.vmem %s0, %s444
      %p446 = pneg %p56
      %p447 = pneg %p53
      %s448 = smul.u32 2, %s25
      %p449 = scmp.lt.s32.totalorder %s26, 1
      %s450 = scalar_select %p449, %s26, 1
      %p451 = scmp.lt.s32.totalorder %s448, 1
      %s452 = scalar_select %p451, %s448, 1
      %s453 = smul.addr %s450, 2
      %s454 = sadd.s32 %s452, %s453
      %s455 = smul.addr %s454, 4
      %s456 = scalar_lea.vmem %s1, %s455
      %p457 = pneg %p84
      %p458 = pneg %p81
      %s459 = smul.u32 2, %s25
      %p460 = scmp.lt.s32.totalorder %s26, 1
      %s461 = scalar_select %p460, %s26, 1
      %p462 = scmp.lt.s32.totalorder %s459, 1
      %s463 = scalar_select %p462, %s459, 1
      %s464 = smul.addr %s461, 2
      %s465 = sadd.s32 %s463, %s464
      %s466 = smul.addr %s465, 4
      %s467 = scalar_lea.vmem %s2, %s466
      %p468 = pneg %p112
      %p469 = pneg %p109
      %s470 = smul.u32 2, %s25
      %p471 = scmp.lt.s32.totalorder %s26, 1
      %s472 = scalar_select %p471, %s26, 1
      %p473 = scmp.lt.s32.totalorder %s470, 1
      %s474 = scalar_select %p473, %s470, 1
      %s475 = smul.addr %s472, 2
      %s476 = sadd.s32 %s474, %s475
      %s477 = smul.addr %s476, 4
      %s478 = scalar_lea.vmem %s3, %s477
      %p479 = pneg %p140
      %p480 = pneg %p137
      %s481 = smul.u32 2, %s25
      %p482 = scmp.lt.s32.totalorder %s26, 1
      %s483 = scalar_select %p482, %s26, 1
      %p484 = scmp.lt.s32.totalorder %s481, 1
      %s485 = scalar_select %p484, %s481, 1
      %s486 = smul.addr %s483, 2
      %s487 = sadd.s32 %s485, %s486
      %s488 = smul.addr %s487, 4
      %s489 = scalar_lea.vmem %s4, %s488
      %p490 = pneg %p168
      %p491 = pneg %p165
      %s492 = smul.u32 2, %s25
      %p493 = scmp.lt.s32.totalorder %s26, 1
      %s494 = scalar_select %p493, %s26, 1
      %p495 = scmp.lt.s32.totalorder %s492, 1
      %s496 = scalar_select %p495, %s492, 1
      %s497 = smul.addr %s494, 2
      %s498 = sadd.s32 %s496, %s497
      %s499 = smul.addr %s498, 2
      %s500 = scalar_lea.vmem %s5, %s499
      %p501 = pneg %p196
      %p502 = pneg %p193
      %s503 = smul.u32 2, %s25
      %p504 = scmp.lt.s32.totalorder %s26, 1
      %s505 = scalar_select %p504, %s26, 1
      %p506 = scmp.lt.s32.totalorder %s503, 1
      %s507 = scalar_select %p506, %s503, 1
      %s508 = smul.addr %s505, 2
      %s509 = sadd.s32 %s507, %s508
      %s510 = smul.addr %s509, 2
      %s511 = scalar_lea.vmem %s6, %s510
      %p512 = pneg %p224
      %p513 = pneg %p221
      %s514 = smul.u32 2, %s25
      %p515 = scmp.lt.s32.totalorder %s26, 1
      %s516 = scalar_select %p515, %s26, 1
      %p517 = scmp.lt.s32.totalorder %s514, 1
      %s518 = scalar_select %p517, %s514, 1
      %s519 = smul.addr %s516, 2
      %s520 = sadd.s32 %s518, %s519
      %s521 = scalar_lea.vmem %s7, %s520
      %p522 = pneg %p252
      %p523 = pneg %p249
      %p524 = pneg %p280
      %p525 = pneg %p277
      %p526 = scmp.lt.s32.totalorder %s25, 0
      %s527 = scalar_select %p526, %s25, 0
      %p528 = scmp.lt.s32.totalorder %s26, 1
      %s529 = scalar_select %p528, %s26, 1
      %s530 = smul.addr %s527, 2
      %s531 = sadd.s32 %s529, %s530
      %s532 = scalar_lea.vmem %s8, %s531
      %p533 = pneg %p308
      %p534 = pneg %p305
      %p535 = scmp.lt.s32.totalorder %s25, 0
      %s536 = scalar_select %p535, %s25, 0
      %p537 = scmp.lt.s32.totalorder %s26, 1
      %s538 = scalar_select %p537, %s26, 1
      %s539 = smul.addr %s536, 2
      %s540 = sadd.s32 %s538, %s539
      %s541 = scalar_lea.vmem %s9, %s540
      %s542 = smul.u32 2, %s25
      %p543 = scmp.lt.s32.totalorder %s26, 1
      %s544 = scalar_select %p543, %s26, 1
      %p545 = scmp.lt.s32.totalorder %s542, 1
      %s546 = scalar_select %p545, %s542, 1
      %s547 = smul.addr %s544, 2
      %s548 = sadd.s32 %s546, %s547
      %s549 = smul.addr %s548, 4
      %s550 = scalar_lea.vmem %s0, %s549
      %s551 = smul.u32 2, %s25
      %s552 = smul.u32 2, %s25
      %p553 = scmp.lt.s32.totalorder %s26, 1
      %s554 = scalar_select %p553, %s26, 1
      %p555 = scmp.lt.s32.totalorder %s552, 1
      %s556 = scalar_select %p555, %s552, 1
      %s557 = smul.addr %s554, 2
      %s558 = sadd.s32 %s556, %s557
      %s559 = smul.addr %s558, 4
      %s560 = scalar_lea.vmem %s1, %s559
      %s561 = smul.u32 2, %s25
      %s562 = smul.u32 2, %s25
      %p563 = scmp.lt.s32.totalorder %s26, 1
      %s564 = scalar_select %p563, %s26, 1
      %p565 = scmp.lt.s32.totalorder %s562, 1
      %s566 = scalar_select %p565, %s562, 1
      %s567 = smul.addr %s564, 2
      %s568 = sadd.s32 %s566, %s567
      %s569 = smul.addr %s568, 4
      %s570 = scalar_lea.vmem %s2, %s569
      %s571 = smul.u32 2, %s25
      %s572 = smul.u32 2, %s25
      %p573 = scmp.lt.s32.totalorder %s26, 1
      %s574 = scalar_select %p573, %s26, 1
      %p575 = scmp.lt.s32.totalorder %s572, 1
      %s576 = scalar_select %p575, %s572, 1
      %s577 = smul.addr %s574, 2
      %s578 = sadd.s32 %s576, %s577
      %s579 = smul.addr %s578, 4
      %s580 = scalar_lea.vmem %s3, %s579
      %s581 = smul.u32 2, %s25
      %s582 = smul.u32 2, %s25
      %p583 = scmp.lt.s32.totalorder %s26, 1
      %s584 = scalar_select %p583, %s26, 1
      %p585 = scmp.lt.s32.totalorder %s582, 1
      %s586 = scalar_select %p585, %s582, 1
      %s587 = smul.addr %s584, 2
      %s588 = sadd.s32 %s586, %s587
      %s589 = smul.addr %s588, 4
      %s590 = scalar_lea.vmem %s4, %s589
      %s591 = smul.u32 2, %s25
      %s592 = smul.u32 2, %s25
      %p593 = scmp.lt.s32.totalorder %s26, 1
      %s594 = scalar_select %p593, %s26, 1
      %p595 = scmp.lt.s32.totalorder %s592, 1
      %s596 = scalar_select %p595, %s592, 1
      %s597 = smul.addr %s594, 2
      %s598 = sadd.s32 %s596, %s597
      %s599 = smul.addr %s598, 2
      %s600 = scalar_lea.vmem %s5, %s599
      %s601 = smul.u32 2, %s25
      %s602 = smul.u32 2, %s25
      %p603 = scmp.lt.s32.totalorder %s26, 1
      %s604 = scalar_select %p603, %s26, 1
      %p605 = scmp.lt.s32.totalorder %s602, 1
      %s606 = scalar_select %p605, %s602, 1
      %s607 = smul.addr %s604, 2
      %s608 = sadd.s32 %s606, %s607
      %s609 = smul.addr %s608, 2
      %s610 = scalar_lea.vmem %s6, %s609
      %s611 = smul.u32 2, %s25
      %s612 = smul.u32 2, %s25
      %p613 = scmp.lt.s32.totalorder %s26, 1
      %s614 = scalar_select %p613, %s26, 1
      %p615 = scmp.lt.s32.totalorder %s612, 1
      %s616 = scalar_select %p615, %s612, 1
      %s617 = smul.addr %s614, 2
      %s618 = sadd.s32 %s616, %s617
      %s619 = scalar_lea.vmem %s7, %s618
      %s620 = smul.u32 2, %s25
      %p621 = scmp.lt.s32.totalorder %s25, 0
      %s622 = scalar_select %p621, %s25, 0
      %p623 = scmp.lt.s32.totalorder %s26, 1
      %s624 = scalar_select %p623, %s26, 1
      %s625 = smul.addr %s622, 2
      %s626 = sadd.s32 %s624, %s625
      %s627 = scalar_lea.vmem %s8, %s626
      %p628 = scmp.lt.s32.totalorder %s25, 0
      %s629 = scalar_select %p628, %s25, 0
      %p630 = scmp.lt.s32.totalorder %s26, 1
      %s631 = scalar_select %p630, %s26, 1
      %s632 = smul.addr %s629, 2
      %s633 = sadd.s32 %s631, %s632
      %s634 = scalar_lea.vmem %s9, %s633
      %v635 = vld [vmem:[%s619] sm:$0x3]
      %v636 = vlaneseq
      %v637 = vand.u32 %v636, 127
      %v638 = vadd.s32 %v637, 128
      %s639 = smul.u32 %s25, 256
      %v640 = vstv %s639
      %v641 = vadd.s32 %v640, %v637
      %v642 = vadd.s32 %v640, %v638
      %vm643 = vcmp.lt.s32.totalorder %v641, 256
      %vm644 = vcmp.lt.s32.totalorder %v642, 256
      %vm645 = vcmp.ne.s32.totalorder %v635, 4294967295
      %v646 = vsel %vm645, 1, 0
      %v647 = vlaneseq
      %v648 = vshrl.u32 %v647, 7
      %v649 = vsub.s32 0, %v648
      %v650 = vrot.slane %v646, %v649
      %v651 = vlaneseq
      %v652 = vshrl.u32 %v651, 7
      %v653 = vsub.s32 1, %v652
      %v654 = vrot.slane %v646, %v653
      %vm655 = vcmp.ne.s32.totalorder %v650, 0
      %vm656 = vcmp.ne.s32.totalorder %v654, 0
      %vm657 = vmand %vm643, %vm655
      %vm658 = vmand %vm644, %vm656
      %v659 = vlaneseq
      %v660 = vshrl.u32 %v659, 7
      %v661 = vlaneseq
      %v662 = vshrl.u32 %v661, 7
      %v663 = vsub.s32 0, %v662
      %v664 = vrot.slane %v635, %v663
      %v665 = vlaneseq
      %v666 = vshrl.u32 %v665, 7
      %v667 = vsub.s32 1, %v666
      %v668 = vrot.slane %v635, %v667
      %vm669 = vcmp.eq.s32.totalorder %v660, %v664
      %vm670 = vcmp.eq.s32.totalorder %v660, %v668
      %v671 = vsel %vm669, 1, 0
      %v672 = vsel %vm670, 1, 0
      %v673 = vcvt.s32.f32 %v671
      %v674 = vcvt.s32.f32 %v672
      %v675 = vld [vmem:[%s550] sm:$0xff]
      %v677 = vcombine.high %v675, %v675
      %vm679 = vcmask 1043456
      %v680 = vsel %vm679, %v675, -inf
      %v681 = vrot.slane %v680, 4
      %v682 = vmax.f32 %v680, %v681
      %v683 = vrot.slane %v682, 2
      %v684 = vmax.f32 %v682, %v683
      %v685 = vrot.slane %v684, 1
      %v686 = vmax.f32 %v684, %v685
      %v687 = vsel %vm679, %v677, -inf
      %v688 = vrot.slane %v687, 4
      %v689 = vmax.f32 %v687, %v688
      %v690 = vrot.slane %v689, 2
      %v691 = vmax.f32 %v689, %v690
      %v692 = vrot.slane %v691, 1
      %v693 = vmax.f32 %v691, %v692
      %v696 = vcombine.low %v686, %v693
      %v698 = vsub.f32 %v675, %v696
      %v699 = vmul.f32 %v698, 1.442695
      %v700 = vpow.pop %v699
      %v702 = vcombine.high %v700, %v700
      %v704 = vsel %vm679, %v700, 0.0
      %v705 = vrot.slane %v704, 4
      %v706 = vadd.f32 %v704, %v705
      %v707 = vrot.slane %v706, 2
      %v708 = vadd.f32 %v706, %v707
      %v709 = vrot.slane %v708, 1
      %v710 = vadd.f32 %v708, %v709
      %v711 = vsel %vm679, %v702, 0.0
      %v712 = vrot.slane %v711, 4
      %v713 = vadd.f32 %v711, %v712
      %v714 = vrot.slane %v713, 2
      %v715 = vadd.f32 %v713, %v714
      %v716 = vrot.slane %v715, 1
      %v717 = vadd.f32 %v715, %v716
      %v718 = vlog2.pop %v710
      %v719 = vmul.f32 %v718, 0.6931472
      %v720 = vlog2.pop %v717
      %v721 = vmul.f32 %v720, 0.6931472
      %v722 = vadd.f32 %v719, %v686
      %v723 = vadd.f32 %v721, %v693
      %v726 = vcombine.low %v673, %v674
      %v728 = vmul.f32 %v675, %v726
      %v730 = vcombine.high %v728, %v728
      %v732 = vsel %vm679, %v728, 0.0
      %v733 = vrot.slane %v732, 4
      %v734 = vadd.f32 %v732, %v733
      %v735 = vrot.slane %v734, 2
      %v736 = vadd.f32 %v734, %v735
      %v737 = vrot.slane %v736, 1
      %v738 = vadd.f32 %v736, %v737
      %v739 = vsel %vm679, %v730, 0.0
      %v740 = vrot.slane %v739, 4
      %v741 = vadd.f32 %v739, %v740
      %v742 = vrot.slane %v741, 2
      %v743 = vadd.f32 %v741, %v742
      %v744 = vrot.slane %v743, 1
      %v745 = vadd.f32 %v743, %v744
      %v746 = vsub.f32 %v722, %v738
      %v747 = vsub.f32 %v723, %v745
      %v748 = vsel %vm657, %v746, 0.0
      %v749 = vsel %vm658, %v747, 0.0
      %v750 = vld [vmem:[%s560] sm:$0xff]
      %v752 = vcombine.high %v750, %v750
      %v754 = vsel %vm679, %v750, -inf
      %v755 = vrot.slane %v754, 4
      %v756 = vmax.f32 %v754, %v755
      %v757 = vrot.slane %v756, 2
      %v758 = vmax.f32 %v756, %v757
      %v759 = vrot.slane %v758, 1
      %v760 = vmax.f32 %v758, %v759
      %v761 = vsel %vm679, %v752, -inf
      %v762 = vrot.slane %v761, 4
      %v763 = vmax.f32 %v761, %v762
      %v764 = vrot.slane %v763, 2
      %v765 = vmax.f32 %v763, %v764
      %v766 = vrot.slane %v765, 1
      %v767 = vmax.f32 %v765, %v766
      %v770 = vcombine.low %v760, %v767
      %v772 = vsub.f32 %v750, %v770
      %v773 = vmul.f32 %v772, 1.442695
      %v774 = vpow.pop %v773
      %v776 = vcombine.high %v774, %v774
      %v778 = vsel %vm679, %v774, 0.0
      %v779 = vrot.slane %v778, 4
      %v780 = vadd.f32 %v778, %v779
      %v781 = vrot.slane %v780, 2
      %v782 = vadd.f32 %v780, %v781
      %v783 = vrot.slane %v782, 1
      %v784 = vadd.f32 %v782, %v783
      %v785 = vsel %vm679, %v776, 0.0
      %v786 = vrot.slane %v785, 4
      %v787 = vadd.f32 %v785, %v786
      %v788 = vrot.slane %v787, 2
      %v789 = vadd.f32 %v787, %v788
      %v790 = vrot.slane %v789, 1
      %v791 = vadd.f32 %v789, %v790
      %v792 = vlog2.pop %v784
      %v793 = vmul.f32 %v792, 0.6931472
      %v794 = vlog2.pop %v791
      %v795 = vmul.f32 %v794, 0.6931472
      %v796 = vadd.f32 %v793, %v760
      %v797 = vadd.f32 %v795, %v767
      %v798 = vmul.f32 %v750, %v726
      %v800 = vcombine.high %v798, %v798
      %v802 = vsel %vm679, %v798, 0.0
      %v803 = vrot.slane %v802, 4
      %v804 = vadd.f32 %v802, %v803
      %v805 = vrot.slane %v804, 2
      %v806 = vadd.f32 %v804, %v805
      %v807 = vrot.slane %v806, 1
      %v808 = vadd.f32 %v806, %v807
      %v809 = vsel %vm679, %v800, 0.0
      %v810 = vrot.slane %v809, 4
      %v811 = vadd.f32 %v809, %v810
      %v812 = vrot.slane %v811, 2
      %v813 = vadd.f32 %v811, %v812
      %v814 = vrot.slane %v813, 1
      %v815 = vadd.f32 %v813, %v814
      %v816 = vsub.f32 %v796, %v808
      %v817 = vsub.f32 %v797, %v815
      %v818 = vsel %vm657, %v816, 0.0
      %v819 = vsel %vm658, %v817, 0.0
      %v820 = vld [vmem:[%s570] sm:$0xff]
      %v822 = vcombine.high %v820, %v820
      %v824 = vsel %vm679, %v820, -inf
      %v825 = vrot.slane %v824, 4
      %v826 = vmax.f32 %v824, %v825
      %v827 = vrot.slane %v826, 2
      %v828 = vmax.f32 %v826, %v827
      %v829 = vrot.slane %v828, 1
      %v830 = vmax.f32 %v828, %v829
      %v831 = vsel %vm679, %v822, -inf
      %v832 = vrot.slane %v831, 4
      %v833 = vmax.f32 %v831, %v832
      %v834 = vrot.slane %v833, 2
      %v835 = vmax.f32 %v833, %v834
      %v836 = vrot.slane %v835, 1
      %v837 = vmax.f32 %v835, %v836
      %v840 = vcombine.low %v830, %v837
      %v842 = vsub.f32 %v820, %v840
      %v843 = vmul.f32 %v842, 1.442695
      %v844 = vpow.pop %v843
      %v846 = vcombine.high %v844, %v844
      %v848 = vsel %vm679, %v844, 0.0
      %v849 = vrot.slane %v848, 4
      %v850 = vadd.f32 %v848, %v849
      %v851 = vrot.slane %v850, 2
      %v852 = vadd.f32 %v850, %v851
      %v853 = vrot.slane %v852, 1
      %v854 = vadd.f32 %v852, %v853
      %v855 = vsel %vm679, %v846, 0.0
      %v856 = vrot.slane %v855, 4
      %v857 = vadd.f32 %v855, %v856
      %v858 = vrot.slane %v857, 2
      %v859 = vadd.f32 %v857, %v858
      %v860 = vrot.slane %v859, 1
      %v861 = vadd.f32 %v859, %v860
      %v862 = vlog2.pop %v854
      %v863 = vmul.f32 %v862, 0.6931472
      %v864 = vlog2.pop %v861
      %v865 = vmul.f32 %v864, 0.6931472
      %v866 = vadd.f32 %v863, %v830
      %v867 = vadd.f32 %v865, %v837
      %v868 = vmul.f32 %v820, %v726
      %v870 = vcombine.high %v868, %v868
      %v872 = vsel %vm679, %v868, 0.0
      %v873 = vrot.slane %v872, 4
      %v874 = vadd.f32 %v872, %v873
      %v875 = vrot.slane %v874, 2
      %v876 = vadd.f32 %v874, %v875
      %v877 = vrot.slane %v876, 1
      %v878 = vadd.f32 %v876, %v877
      %v879 = vsel %vm679, %v870, 0.0
      %v880 = vrot.slane %v879, 4
      %v881 = vadd.f32 %v879, %v880
      %v882 = vrot.slane %v881, 2
      %v883 = vadd.f32 %v881, %v882
      %v884 = vrot.slane %v883, 1
      %v885 = vadd.f32 %v883, %v884
      %v886 = vsub.f32 %v866, %v878
      %v887 = vsub.f32 %v867, %v885
      %v888 = vsel %vm657, %v886, 0.0
      %v889 = vsel %vm658, %v887, 0.0
      %v890 = vld [vmem:[%s580] sm:$0xff]
      %v892 = vcombine.high %v890, %v890
      %v894 = vsel %vm679, %v890, -inf
      %v895 = vrot.slane %v894, 4
      %v896 = vmax.f32 %v894, %v895
      %v897 = vrot.slane %v896, 2
      %v898 = vmax.f32 %v896, %v897
      %v899 = vrot.slane %v898, 1
      %v900 = vmax.f32 %v898, %v899
      %v901 = vsel %vm679, %v892, -inf
      %v902 = vrot.slane %v901, 4
      %v903 = vmax.f32 %v901, %v902
      %v904 = vrot.slane %v903, 2
      %v905 = vmax.f32 %v903, %v904
      %v906 = vrot.slane %v905, 1
      %v907 = vmax.f32 %v905, %v906
      %v910 = vcombine.low %v900, %v907
      %v912 = vsub.f32 %v890, %v910
      %v913 = vmul.f32 %v912, 1.442695
      %v914 = vpow.pop %v913
      %v916 = vcombine.high %v914, %v914
      %v918 = vsel %vm679, %v914, 0.0
      %v919 = vrot.slane %v918, 4
      %v920 = vadd.f32 %v918, %v919
      %v921 = vrot.slane %v920, 2
      %v922 = vadd.f32 %v920, %v921
      %v923 = vrot.slane %v922, 1
      %v924 = vadd.f32 %v922, %v923
      %v925 = vsel %vm679, %v916, 0.0
      %v926 = vrot.slane %v925, 4
      %v927 = vadd.f32 %v925, %v926
      %v928 = vrot.slane %v927, 2
      %v929 = vadd.f32 %v927, %v928
      %v930 = vrot.slane %v929, 1
      %v931 = vadd.f32 %v929, %v930
      %v932 = vlog2.pop %v924
      %v933 = vmul.f32 %v932, 0.6931472
      %v934 = vlog2.pop %v931
      %v935 = vmul.f32 %v934, 0.6931472
      %v936 = vadd.f32 %v933, %v900
      %v937 = vadd.f32 %v935, %v907
      %v938 = vmul.f32 %v890, %v726
      %v940 = vcombine.high %v938, %v938
      %v942 = vsel %vm679, %v938, 0.0
      %v943 = vrot.slane %v942, 4
      %v944 = vadd.f32 %v942, %v943
      %v945 = vrot.slane %v944, 2
      %v946 = vadd.f32 %v944, %v945
      %v947 = vrot.slane %v946, 1
      %v948 = vadd.f32 %v946, %v947
      %v949 = vsel %vm679, %v940, 0.0
      %v950 = vrot.slane %v949, 4
      %v951 = vadd.f32 %v949, %v950
      %v952 = vrot.slane %v951, 2
      %v953 = vadd.f32 %v951, %v952
      %v954 = vrot.slane %v953, 1
      %v955 = vadd.f32 %v953, %v954
      %v956 = vsub.f32 %v936, %v948
      %v957 = vsub.f32 %v937, %v955
      %v958 = vsel %vm657, %v956, 0.0
      %v959 = vsel %vm658, %v957, 0.0
      %v960 = vld [vmem:[%s590] sm:$0xff]
      %v962 = vcombine.high %v960, %v960
      %v964 = vsel %vm679, %v960, -inf
      %v965 = vrot.slane %v964, 4
      %v966 = vmax.f32 %v964, %v965
      %v967 = vrot.slane %v966, 2
      %v968 = vmax.f32 %v966, %v967
      %v969 = vrot.slane %v968, 1
      %v970 = vmax.f32 %v968, %v969
      %v971 = vsel %vm679, %v962, -inf
      %v972 = vrot.slane %v971, 4
      %v973 = vmax.f32 %v971, %v972
      %v974 = vrot.slane %v973, 2
      %v975 = vmax.f32 %v973, %v974
      %v976 = vrot.slane %v975, 1
      %v977 = vmax.f32 %v975, %v976
      %v980 = vcombine.low %v970, %v977
      %v982 = vsub.f32 %v960, %v980
      %v983 = vmul.f32 %v982, 1.442695
      %v984 = vpow.pop %v983
      %v986 = vcombine.high %v984, %v984
      %v988 = vsel %vm679, %v984, 0.0
      %v989 = vrot.slane %v988, 4
      %v990 = vadd.f32 %v988, %v989
      %v991 = vrot.slane %v990, 2
      %v992 = vadd.f32 %v990, %v991
      %v993 = vrot.slane %v992, 1
      %v994 = vadd.f32 %v992, %v993
      %v995 = vsel %vm679, %v986, 0.0
      %v996 = vrot.slane %v995, 4
      %v997 = vadd.f32 %v995, %v996
      %v998 = vrot.slane %v997, 2
      %v999 = vadd.f32 %v997, %v998
      %v1000 = vrot.slane %v999, 1
      %v1001 = vadd.f32 %v999, %v1000
      %v1002 = vlog2.pop %v994
      %v1003 = vmul.f32 %v1002, 0.6931472
      %v1004 = vlog2.pop %v1001
      %v1005 = vmul.f32 %v1004, 0.6931472
      %v1006 = vadd.f32 %v1003, %v970
      %v1007 = vadd.f32 %v1005, %v977
      %v1008 = vmul.f32 %v960, %v726
      %v1010 = vcombine.high %v1008, %v1008
      %v1012 = vsel %vm679, %v1008, 0.0
      %v1013 = vrot.slane %v1012, 4
      %v1014 = vadd.f32 %v1012, %v1013
      %v1015 = vrot.slane %v1014, 2
      %v1016 = vadd.f32 %v1014, %v1015
      %v1017 = vrot.slane %v1016, 1
      %v1018 = vadd.f32 %v1016, %v1017
      %v1019 = vsel %vm679, %v1010, 0.0
      %v1020 = vrot.slane %v1019, 4
      %v1021 = vadd.f32 %v1019, %v1020
      %v1022 = vrot.slane %v1021, 2
      %v1023 = vadd.f32 %v1021, %v1022
      %v1024 = vrot.slane %v1023, 1
      %v1025 = vadd.f32 %v1023, %v1024
      %v1026 = vsub.f32 %v1006, %v1018
      %v1027 = vsub.f32 %v1007, %v1025
      %v1028 = vsel %vm657, %v1026, 0.0
      %v1029 = vsel %vm658, %v1027, 0.0
      %v1030 = vld [vmem:[%s600] sm:$0xf]
      %v1031 = vld [vmem:[%s610] sm:$0xf]
      %v1032 = vfloor.f32 %v1030
      %v1033 = vsub.f32 %v1032, %v1030
      %v1034 = vceil.f32 %v1030
      %v1035 = vsub.f32 %v1034, %v1030
      %v1037 = vlaneseq
      %v1038 = vshrl.u32 %v1037, 7
      %v1039 = vsub.s32 0, %v1038
      %v1040 = vrot.slane %v1035, %v1039
      %v1041 = vlaneseq
      %v1042 = vshrl.u32 %v1041, 7
      %v1043 = vsub.s32 2, %v1042
      %v1044 = vrot.slane %v1035, %v1043
      %v1048 = vlaneseq
      %v1049 = vshrl.u32 %v1048, 7
      %v1050 = vsub.s32 1, %v1049
      %v1051 = vrot.slane %v1033, %v1050
      %v1052 = vlaneseq
      %v1053 = vshrl.u32 %v1052, 7
      %v1054 = vsub.s32 3, %v1053
      %v1055 = vrot.slane %v1033, %v1054
      %vm1058 = vcmask 1040384
      %v1059 = vsel %vm1058, %v1040, %v1051
      %v1060 = vsel %vm1058, %v1044, %v1055
      %v1061 = vlaneseq
      %v1062 = vshrl.u32 %v1061, 7
      %v1063 = vsub.s32 0, %v1062
      %v1064 = vrot.slane %v1033, %v1063
      %v1065 = vlaneseq
      %v1066 = vshrl.u32 %v1065, 7
      %v1067 = vsub.s32 2, %v1066
      %v1068 = vrot.slane %v1033, %v1067
      %v1071 = vlaneseq
      %v1072 = vshrl.u32 %v1071, 7
      %v1073 = vsub.s32 1, %v1072
      %v1074 = vrot.slane %v1035, %v1073
      %v1075 = vlaneseq
      %v1076 = vshrl.u32 %v1075, 7
      %v1077 = vsub.s32 3, %v1076
      %v1078 = vrot.slane %v1035, %v1077
      %v1081 = vsel %vm1058, %v1064, %v1074
      %v1082 = vsel %vm1058, %v1068, %v1078
      %vm1083 = vcmp.lt.f32.partialorder %v818, %v748
      %vm1084 = vcmp.lt.f32.partialorder %v819, %v749
      %v1085 = vsel %vm1083, 1, 0
      %v1086 = vsel %vm1084, 1, 0
      %v1087 = vcvt.s32.f32 %v1085
      %v1088 = vcvt.s32.f32 %v1086
      %v1089 = vsub.f32 %v1033, %v1031
      %v1090 = vlaneseq
      %v1091 = vshrl.u32 %v1090, 7
      %v1092 = vsub.s32 0, %v1091
      %v1093 = vrot.slane %v1087, %v1092
      %v1094 = vlaneseq
      %v1095 = vshrl.u32 %v1094, 7
      %v1096 = vsub.s32 0, %v1095
      %v1097 = vrot.slane %v1088, %v1096
      %v1100 = vunpack.c.l.s4 1983009808
      %v1101 = vunpack.c.0.s8 %v1100
      %v1102 = vlaneseq
      %v1103 = vshrl.u32 %v1102, 7
      %v1104 = vsub.s32 %v1101, %v1103
      %v1105 = vrot.slane %v1089, %v1104
      %v1106 = vcombine.high %v1105, %v1105
      %v1109 = vmul.f32 %v1093, %v1105
      %v1110 = vmul.f32 %v1097, %v1106
      %v1113 = vcombine.low %v1109, %v1110
      %v1115 = vunpack.c.l.s4 1983009808
      %v1116 = vunpack.c.0.s8 %v1115
      %v1117 = vlaneseq
      %v1118 = vshrl.u32 %v1117, 7
      %v1119 = vsub.s32 %v1116, %v1118
      %v1120 = vrot.slane %v1113, %v1119
      %v1122 = vadd.f32 %v1031, %v1120
      %v1123 = vmin.f32 %v818, %v748
      %v1124 = vmin.f32 %v819, %v749
      %vm1125 = vcmp.lt.f32.partialorder %v888, %v1123
      %vm1126 = vcmp.lt.f32.partialorder %v889, %v1124
      %v1127 = vsel %vm1125, 1, 0
      %v1128 = vsel %vm1126, 1, 0
      %v1129 = vcvt.s32.f32 %v1127
      %v1130 = vcvt.s32.f32 %v1128
      %v1133 = vunpack.c.l.s4 1983009808
      %v1134 = vunpack.c.0.s8 %v1133
      %v1135 = vlaneseq
      %v1136 = vshrl.u32 %v1135, 7
      %v1137 = vsub.s32 %v1134, %v1136
      %v1138 = vrot.slane %v1122, %v1137
      %v1139 = vcombine.high %v1138, %v1138
      %v1142 = vsub.f32 %v1059, %v1138
      %v1143 = vsub.f32 %v1060, %v1139
      %v1144 = vlaneseq
      %v1145 = vshrl.u32 %v1144, 7
      %v1146 = vsub.s32 0, %v1145
      %v1147 = vrot.slane %v1129, %v1146
      %v1148 = vlaneseq
      %v1149 = vshrl.u32 %v1148, 7
      %v1150 = vsub.s32 0, %v1149
      %v1151 = vrot.slane %v1130, %v1150
      %v1152 = vmul.f32 %v1147, %v1142
      %v1153 = vmul.f32 %v1151, %v1143
      %v1156 = vcombine.low %v1152, %v1153
      %v1158 = vunpack.c.l.s4 1983009808
      %v1159 = vunpack.c.0.s8 %v1158
      %v1160 = vlaneseq
      %v1161 = vshrl.u32 %v1160, 7
      %v1162 = vsub.s32 %v1159, %v1161
      %v1163 = vrot.slane %v1156, %v1162
      %v1165 = vadd.f32 %v1122, %v1163
      %v1166 = vmin.f32 %v888, %v1123
      %v1167 = vmin.f32 %v889, %v1124
      %vm1168 = vcmp.lt.f32.partialorder %v958, %v1166
      %vm1169 = vcmp.lt.f32.partialorder %v959, %v1167
      %v1170 = vsel %vm1168, 1, 0
      %v1171 = vsel %vm1169, 1, 0
      %v1172 = vcvt.s32.f32 %v1170
      %v1173 = vcvt.s32.f32 %v1171
      %v1176 = vunpack.c.l.s4 1983009808
      %v1177 = vunpack.c.0.s8 %v1176
      %v1178 = vlaneseq
      %v1179 = vshrl.u32 %v1178, 7
      %v1180 = vsub.s32 %v1177, %v1179
      %v1181 = vrot.slane %v1165, %v1180
      %v1182 = vcombine.high %v1181, %v1181
      %v1185 = vsub.f32 %v1081, %v1181
      %v1186 = vsub.f32 %v1082, %v1182
      %v1187 = vlaneseq
      %v1188 = vshrl.u32 %v1187, 7
      %v1189 = vsub.s32 0, %v1188
      %v1190 = vrot.slane %v1172, %v1189
      %v1191 = vlaneseq
      %v1192 = vshrl.u32 %v1191, 7
      %v1193 = vsub.s32 0, %v1192
      %v1194 = vrot.slane %v1173, %v1193
      %v1195 = vmul.f32 %v1190, %v1185
      %v1196 = vmul.f32 %v1194, %v1186
      %v1199 = vcombine.low %v1195, %v1196
      %v1201 = vunpack.c.l.s4 1983009808
      %v1202 = vunpack.c.0.s8 %v1201
      %v1203 = vlaneseq
      %v1204 = vshrl.u32 %v1203, 7
      %v1205 = vsub.s32 %v1202, %v1204
      %v1206 = vrot.slane %v1199, %v1205
      %v1208 = vadd.f32 %v1165, %v1206
      %v1209 = vmin.f32 %v958, %v1166
      %v1210 = vmin.f32 %v959, %v1167
      %vm1211 = vcmp.lt.f32.partialorder %v1028, %v1209
      %vm1212 = vcmp.lt.f32.partialorder %v1029, %v1210
      %v1213 = vsel %vm1211, 1, 0
      %v1214 = vsel %vm1212, 1, 0
      %v1215 = vcvt.s32.f32 %v1213
      %v1216 = vcvt.s32.f32 %v1214
      %v1217 = vsub.f32 %v1035, %v1208
      %v1218 = vlaneseq
      %v1219 = vshrl.u32 %v1218, 7
      %v1220 = vsub.s32 0, %v1219
      %v1221 = vrot.slane %v1215, %v1220
      %v1222 = vlaneseq
      %v1223 = vshrl.u32 %v1222, 7
      %v1224 = vsub.s32 0, %v1223
      %v1225 = vrot.slane %v1216, %v1224
      %v1228 = vunpack.c.l.s4 1983009808
      %v1229 = vunpack.c.0.s8 %v1228
      %v1230 = vlaneseq
      %v1231 = vshrl.u32 %v1230, 7
      %v1232 = vsub.s32 %v1229, %v1231
      %v1233 = vrot.slane %v1217, %v1232
      %v1234 = vcombine.high %v1233, %v1233
      %v1237 = vmul.f32 %v1221, %v1233
      %v1238 = vmul.f32 %v1225, %v1234
      %v1241 = vcombine.low %v1237, %v1238
      %v1243 = vunpack.c.l.s4 1983009808
      %v1244 = vunpack.c.0.s8 %v1243
      %v1245 = vlaneseq
      %v1246 = vshrl.u32 %v1245, 7
      %v1247 = vsub.s32 %v1244, %v1246
      %v1248 = vrot.slane %v1241, %v1247
      %v1250 = vadd.f32 %v1208, %v1248
      %v1251 = vmin.f32 %v1028, %v1209
      %v1252 = vmin.f32 %v1029, %v1210
      %vm1253 = vcmp.gt.f32.partialorder %v748, %v1251
      %vm1254 = vcmp.gt.f32.partialorder %v749, %v1252
      %v1255 = vsel %vm1253, 1, 0
      %v1256 = vsel %vm1254, 1, 0
      %v1257 = vcvt.s32.f32 %v1255
      %v1258 = vcvt.s32.f32 %v1256
      %v1259 = vmul.f32 %v1257, 0.3
      %v1260 = vmul.f32 %v1258, 0.3
      %v1261 = vadd.f32 %v1259, 1.0
      %v1262 = vadd.f32 %v1260, 1.0
      %v1263 = vmul.f32 %v748, %v1261
      %v1264 = vmul.f32 %v749, %v1262
      %v1265 = vsub.f32 %v1250, %v1031
      %v1266 = vand.u32 2147483647, %v1265
      %vm1267 = vcmp.lt.f32.partialorder %v1266, 1.0
      %v1268 = vmul.f32 %v1265, 0.5
      %v1269 = vmul.f32 %v1268, %v1265
      %v1270 = vsub.f32 %v1266, 0.5
      %v1271 = vsel %vm1267, %v1269, %v1270
      %v1272 = vsel %vm643, 1, 0
      %v1273 = vsel %vm644, 1, 0
      %vm1274 = vcmp.eq.s32.totalorder %v1272, 1
      %vm1275 = vcmp.eq.s32.totalorder %v1273, 1
      %v1278 = vunpack.c.l.s4 1983009808
      %v1279 = vunpack.c.0.s8 %v1278
      %v1280 = vlaneseq
      %v1281 = vshrl.u32 %v1280, 7
      %v1282 = vsub.s32 %v1279, %v1281
      %v1283 = vrot.slane %v1271, %v1282
      %v1284 = vcombine.high %v1283, %v1283
      %v1287 = vsel %vm1274, %v1283, 0.0
      %v1288 = vsel %vm1275, %v1284, 0.0
      %v1289 = vsel %vm1058, %v1263, 0.0
      %v1290 = vsel %vm1058, %v1264, 0.0
      %v1291 = vadd.f32 %v1289, %v1290
      %1292 = vadd.xlane.f32.xlu0 %v1291
      %v1293 = vpop.xlane.xlu0 %1292
      %v1294 = vrot.slane %v1293, 4
      %v1295 = vadd.f32 %v1293, %v1294
      %v1296 = vrot.slane %v1295, 2
      %v1297 = vadd.f32 %v1295, %v1296
      %v1298 = vrot.slane %v1297, 1
      %v1299 = vadd.f32 %v1297, %v1298
      %s1300 = vtos %v1299
      %v1301 = vstv %s1300
      %1302 = vst [vmem:[%s627] sm:$0x1] %v1301
      %vm1303 = vcmask 1041408
      %v1304 = vsel %vm1303, %v1287, 0.0
      %v1305 = vsel %vm1303, %v1288, 0.0
      %v1306 = vadd.f32 %v1304, %v1305
      %1307 = vadd.xlane.f32.xlu0 %v1306
      %v1308 = vpop.xlane.xlu0 %1307
      %v1309 = vrot.slane %v1308, 4
      %v1310 = vadd.f32 %v1308, %v1309
      %v1311 = vrot.slane %v1310, 2
      %v1312 = vadd.f32 %v1310, %v1311
      %v1313 = vrot.slane %v1312, 1
      %v1314 = vadd.f32 %v1312, %v1313
      %s1315 = vtos %v1314
      %v1316 = vstv %s1315
      %1317 = vst [vmem:[%s634] sm:$0x1] %v1316
      %p1318 = scmp.lt.s32.totalorder %s25, 0
      %s1319 = scalar_select %p1318, %s25, 0
      %p1320 = scmp.lt.s32.totalorder %s26, 1
      %s1321 = scalar_select %p1320, %s26, 1
      %s1322 = smul.addr %s1319, 2
      %s1323 = sadd.s32 %s1321, %s1322
      %s1324 = scalar_lea.vmem %s8, %s1323
      %p1325 = scmp.lt.s32.totalorder %s25, 0
      %s1326 = scalar_select %p1325, %s25, 0
      %p1327 = scmp.lt.s32.totalorder %s26, 1
      %s1328 = scalar_select %p1327, %s26, 1
      %s1329 = smul.addr %s1326, 2
      %s1330 = sadd.s32 %s1328, %s1329
      %s1331 = scalar_lea.vmem %s9, %s1330
      // Predicated region
      $region53: #{offset_losses_forward.1} parent=51 // pred_check
        %p1332 = pneg %p277
      $region54: #{offset_losses_forward.1} parent=51 // pred_check_branch
        %1334 = sbr.rel (%p1332) target = $region56
      $region55: #{offset_losses_forward.1} parent=51 // pred_region
        _
      $region56: #{offset_losses_forward.1} parent=51 // pred_fallthru
        _
      // Predicated region
      $region57: #{offset_losses_forward.1} parent=51 // pred_check
        %p1335 = pneg %p305
      $region58: #{offset_losses_forward.1} parent=51 // pred_check_branch
        %1337 = sbr.rel (%p1335) target = $region60
      $region59: #{offset_losses_forward.1} parent=51 // pred_region
        _
      $region60: #{offset_losses_forward.1} parent=51 // pred_fallthru
        _
    $region52: #{offset_losses_forward.1} parent=5 // pred_fallthru
      _
    %p1338 = scmp.le.s32.totalorder 2, %s16
    // Predicated region
    $region61: #{offset_losses_forward.1} parent=5 // pred_check
      %p1339 = pneg %p1338
    $region62: #{offset_losses_forward.1} parent=5 // pred_check_branch
      %1341 = sbr.rel (%p1339) target = $region64
    $region63: #{offset_losses_forward.1} parent=5 // pred_region
      %s1342 = ssub.s32 %s16, 2
      // Predicated region
      $region65: #{offset_losses_forward.1} parent=63 // pred_check
        %p1343 = pneg %p283
      $region66: #{offset_losses_forward.1} parent=63 // pred_check_branch
        %1345 = sbr.rel (%p1343) target = $region68
      $region67: #{offset_losses_forward.1} parent=63 // pred_region
        %p1346 = scmp.lt.s32.totalorder %s27, 0
        %s1347 = scalar_select %p1346, %s27, 0
        %p1348 = scmp.lt.s32.totalorder %s28, 1
        %s1349 = scalar_select %p1348, %s28, 1
        %s1350 = smul.addr %s1347, 2
        %s1351 = sadd.s32 %s1349, %s1350
        %s1352 = scalar_lea.vmem %s8, %s1351
      $region68: #{offset_losses_forward.1} parent=63 // pred_fallthru
        _
      // Predicated region
      $region69: #{offset_losses_forward.1} parent=63 // pred_check
        %p1353 = pneg %p311
      $region70: #{offset_losses_forward.1} parent=63 // pred_check_branch
        %1355 = sbr.rel (%p1353) target = $region72
      $region71: #{offset_losses_forward.1} parent=63 // pred_region
        %p1356 = scmp.lt.s32.totalorder %s27, 0
        %s1357 = scalar_select %p1356, %s27, 0
        %p1358 = scmp.lt.s32.totalorder %s28, 1
        %s1359 = scalar_select %p1358, %s28, 1
        %s1360 = smul.addr %s1357, 2
        %s1361 = sadd.s32 %s1359, %s1360
        %s1362 = scalar_lea.vmem %s9, %s1361
      $region72: #{offset_losses_forward.1} parent=63 // pred_fallthru
        _
    $region64: #{offset_losses_forward.1} parent=5 // pred_fallthru
      _
  $region6: #{offset_losses_forward.1} parent=0 // loop_footer
    %s20 = sadd.s32 1, %s16
  $region7: #{offset_losses_forward.1} parent=0 // loop_footer_branch
    %15 = sbr.rel target = $region3
  $region8: #{offset_losses_forward.1} parent=0 // loop_exit
    _

</llo_original>
